<compile_context>
chip_gen: v7x
topology: tpu7x:2x2x1
jax: 0.10.0
libtpu: 0.0.40
codegen_flags: <defaults>
</compile_context>

<pallas_src>
import jax
import jax.numpy as jnp
import numpy as np
from jax.experimental import pallas as pl
from jax.experimental.pallas import tpu as pltpu


# --------------------------- fused LstmNet kernel -----------------------------
def _make_lstm_net_kernel(num_layers, T, B, H):
    """Build the fused kernel for static num_layers / T / B / H."""

    def kernel(*refs):
        # inputs : x (T,B,F), then (w_ih, w_hh, bias) per layer, fc_w, fc_b
        # outputs: out (B, O)
        # scratch: xw_ref (T,B,4H), act_ref (T,B,H)
        x_ref = refs[0]
        layer_refs = refs[1:1 + 3 * num_layers]
        fc_w_ref, fc_b_ref, out_ref, xw_ref, act_ref = refs[1 + 3 * num_layers:]

        h_last = None
        for l in range(num_layers):                     # static loop over layers
            w_ih_ref = layer_refs[3 * l + 0]
            w_hh_ref = layer_refs[3 * l + 1]
            bias_ref = layer_refs[3 * l + 2]

            # --- hoisted, non-recurrent input projection for the whole
            # sequence: one well-shaped MXU matmul instead of T tiny ones. ---
            x_in = x_ref[...] if l == 0 else act_ref[...]        # (T, B, F_in)
            f_in = x_in.shape[-1]
            xw = jnp.dot(
                x_in.reshape(T * B, f_in), w_ih_ref[...],
                preferred_element_type=jnp.float32,
            ) + bias_ref[...]                                    # bias folded once
            xw_ref[...] = xw.reshape(T, B, 4 * H)

            w_hh = w_hh_ref[...]                  # hoist weight load out of the loop
            write_seq = l < num_layers - 1        # last layer only needs h_T

            def step(t, carry, w_hh=w_hh, write_seq=write_seq):
                h, c = carry
                # serial critical path per step: a single small MXU matmul
                gates = xw_ref[t] + jnp.dot(
                    h, w_hh, preferred_element_type=jnp.float32
                )                                                # (B, 4H)
                # NOTE: for H a multiple of 128 these slices are lane-tile
                # aligned (no cross-lane shifts); at H=32 the cost is tiny.
                i_g = jax.nn.sigmoid(gates[:, 0 * H:1 * H])
                f_g = jax.nn.sigmoid(gates[:, 1 * H:2 * H])
                g_g = jnp.tanh(gates[:, 2 * H:3 * H])
                o_g = jax.nn.sigmoid(gates[:, 3 * H:4 * H])
                c_new = f_g * c + i_g * g_g
                h_new = o_g * jnp.tanh(c_new)
                if write_seq:
                    act_ref[t] = h_new
                return (h_new, c_new)

            h0 = jnp.zeros((B, H), jnp.float32)
            c0 = jnp.zeros((B, H), jnp.float32)
            h_last, _ = jax.lax.fori_loop(0, T, step, (h0, c0), unroll=True)

        # --- fused final Linear on the last timestep's hidden state ---
        out_ref[...] = (
            jnp.dot(h_last, fc_w_ref[...], preferred_element_type=jnp.float32)
            + fc_b_ref[...]
        ).astype(out_ref.dtype)

    return kernel


def lstm_net_forward(x_btf, params):
    """x_btf: (B, T, input_size), batch_first like the PyTorch module."""
    x_tm = jnp.transpose(x_btf, (1, 0, 2)).astype(jnp.float32)   # time-major (T,B,F)
    T, B, _ = x_tm.shape
    layers = params["lstm"]
    num_layers = len(layers)
    H = layers[0]["w_hh"].shape[0]
    O = params["fc_w"].shape[1]

    flat_weights = []
    for layer in layers:
        flat_weights += [layer["w_ih"], layer["w_hh"], layer["bias"]]
    inputs = (x_tm, *flat_weights, params["fc_w"], params["fc_b"])

    kernel = _make_lstm_net_kernel(num_layers, T, B, H)
    vmem_spec = pl.BlockSpec(memory_space=pltpu.MemorySpace.VMEM)

    return pl.pallas_call(
        kernel,
        out_shape=jax.ShapeDtypeStruct((B, O), jnp.float32),
        in_specs=[vmem_spec] * len(inputs),
        out_specs=vmem_spec,
        scratch_shapes=[
            pltpu.VMEM((T, B, 4 * H), jnp.float32),   # hoisted input projection
            pltpu.VMEM((T, B, H), jnp.float32),       # per-layer hidden sequence
        ],
    )(*inputs)


lstm_net_forward_jit = jax.jit(lstm_net_forward)


# ------------------------- deterministic parameters ---------------------------
def init_params(key, input_size, hidden_size, output_size, num_layers):
    bound = 1.0 / np.sqrt(hidden_size)
    params = {"lstm": []}
    for l in range(num_layers):
        in_sz = input_size if l == 0 else hidden_size
        key, k1, k2, k3, k4 = jax.random.split(key, 5)
        w_ih = jax.random.uniform(k1, (in_sz, 4 * hidden_size), jnp.float32, -bound, bound)
        w_hh = jax.random.uniform(k2, (hidden_size, 4 * hidden_size), jnp.float32, -bound, bound)
        b_ih = jax.random.uniform(k3, (4 * hidden_size,), jnp.float32, -bound, bound)
        b_hh = jax.random.uniform(k4, (4 * hidden_size,), jnp.float32, -bound, bound)
        params["lstm"].append(
            {"w_ih": w_ih, "w_hh": w_hh, "bias": (b_ih + b_hh)[None, :]}
        )
    key, k5, k6 = jax.random.split(key, 3)
    params["fc_w"] = jax.random.uniform(k5, (hidden_size, output_size), jnp.float32, -bound, bound)
    params["fc_b"] = jax.random.uniform(k6, (output_size,), jnp.float32, -bound, bound)[None, :]
    return params


# ---------------------------- pure-JAX reference ------------------------------
def reference_forward(x_btf, params):
    B = x_btf.shape[0]
    x = jnp.transpose(x_btf, (1, 0, 2))
    for layer in params["lstm"]:
        H = layer["w_hh"].shape[0]
        h = jnp.zeros((B, H), jnp.float32)
        c = jnp.zeros((B, H), jnp.float32)
        outs = []
        for t in range(x.shape[0]):
            gates = x[t] @ layer["w_ih"] + h @ layer["w_hh"] + layer["bias"]
            i = jax.nn.sigmoid(gates[:, 0 * H:1 * H])
            f = jax.nn.sigmoid(gates[:, 1 * H:2 * H])
            g = jnp.tanh(gates[:, 2 * H:3 * H])
            o = jax.nn.sigmoid(gates[:, 3 * H:4 * H])
            c = f * c + i * g
            h = o * jnp.tanh(c)
            outs.append(h)
        x = jnp.stack(outs, axis=0)
    return x[-1] @ params["fc_w"] + params["fc_b"]


if __name__ == "__main__":
    # Small shapes consistent with the module's forward.
    B, T = 2, 8
    input_size, hidden_size, output_size, num_layers = 16, 32, 8, 2

    key = jax.random.PRNGKey(0)
    key, kx = jax.random.split(key)
    x = jax.random.normal(kx, (B, T, input_size), jnp.float32)
    params = init_params(key, input_size, hidden_size, output_size, num_layers)

    out = lstm_net_forward_jit(x, params)
    out = jax.block_until_ready(out)

    ref = reference_forward(x, params)
    assert out.shape == (B, output_size)
    np.testing.assert_allclose(np.asarray(out), np.asarray(ref), rtol=1e-5, atol=1e-5)

    print("KERNEL_OK")
</pallas_src>

<mosaic_0001>
module attributes {stable_mosaic.version = 11 : i64} {
  func.func @kernel(%arg0: memref<8x2x16xf32, #tpu.memory_space<vmem>>, %arg1: memref<16x128xf32, #tpu.memory_space<vmem>>, %arg2: memref<32x128xf32, #tpu.memory_space<vmem>>, %arg3: memref<1x128xf32, #tpu.memory_space<vmem>>, %arg4: memref<32x128xf32, #tpu.memory_space<vmem>>, %arg5: memref<32x128xf32, #tpu.memory_space<vmem>>, %arg6: memref<1x128xf32, #tpu.memory_space<vmem>>, %arg7: memref<32x8xf32, #tpu.memory_space<vmem>>, %arg8: memref<1x8xf32, #tpu.memory_space<vmem>>, %arg9: memref<2x8xf32, #tpu.memory_space<vmem>>, %arg10: memref<8x2x128xf32, #tpu.memory_space<vmem>>, %arg11: memref<8x2x32xf32, #tpu.memory_space<vmem>>) attributes {dimension_semantics = [], scalar_prefetch = 0 : i64, scratch_operands = 2 : i64, tpu.core_type = #tpu.core_type<tc>} {
    %c0 = arith.constant 0 : index
    %c0_0 = arith.constant 0 : index
    %c0_1 = arith.constant 0 : index
    %0 = vector.load %arg0[%c0, %c0_0, %c0_1] : memref<8x2x16xf32, #tpu.memory_space<vmem>>, vector<8x2x16xf32>
    %1 = vector.shape_cast %0 : vector<8x2x16xf32> to vector<16x16xf32>
    %c0_2 = arith.constant 0 : index
    %c0_3 = arith.constant 0 : index
    %2 = vector.load %arg1[%c0_2, %c0_3] : memref<16x128xf32, #tpu.memory_space<vmem>>, vector<16x128xf32>
    %cst = arith.constant dense<0.000000e+00> : vector<16x128xf32>
    %3 = tpu.matmul %1, %2, %cst {dimension_numbers = #tpu.dot_dimension_numbers<[1], [0], [0], [1], [0, 0, 1, 1], [], []>} : vector<16x16xf32>, vector<16x128xf32>, vector<16x128xf32> -> vector<16x128xf32>
    %c0_4 = arith.constant 0 : index
    %c0_5 = arith.constant 0 : index
    %4 = vector.load %arg3[%c0_4, %c0_5] : memref<1x128xf32, #tpu.memory_space<vmem>>, vector<1x128xf32>
    %5 = vector.broadcast %4 : vector<1x128xf32> to vector<16x128xf32>
    %6 = arith.addf %3, %5 : vector<16x128xf32>
    %7 = vector.shape_cast %6 : vector<16x128xf32> to vector<8x2x128xf32>
    %c0_6 = arith.constant 0 : index
    %c0_7 = arith.constant 0 : index
    %c0_8 = arith.constant 0 : index
    %8 = vector.load %arg10[%c0_6, %c0_7, %c0_8] : memref<8x2x128xf32, #tpu.memory_space<vmem>>, vector<8x2x128xf32>
    tpu.vector_store %arg10[%c0_6, %c0_7, %c0_8], %7 {strides = array<i32>} : memref<8x2x128xf32, #tpu.memory_space<vmem>>, vector<8x2x128xf32>,
    %c0_9 = arith.constant 0 : index
    %c0_10 = arith.constant 0 : index
    %9 = vector.load %arg2[%c0_9, %c0_10] : memref<32x128xf32, #tpu.memory_space<vmem>>, vector<32x128xf32>
    %cst_11 = arith.constant 0.000000e+00 : f32
    %10 = vector.broadcast %cst_11 : f32 to vector<2x32xf32>
    %cst_12 = arith.constant 0.000000e+00 : f32
    %11 = vector.broadcast %cst_12 : f32 to vector<2x32xf32>
    %c0_i32 = arith.constant 0 : i32
    %12 = arith.index_cast %c0_i32 : i32 to index
    %c0_13 = arith.constant 0 : index
    %c0_14 = arith.constant 0 : index
    %13 = vector.load %arg10[%12, %c0_13, %c0_14] : memref<8x2x128xf32, #tpu.memory_space<vmem>>, vector<1x2x128xf32>
    %14 = vector.shape_cast %13 : vector<1x2x128xf32> to vector<2x128xf32>
    %cst_15 = arith.constant dense<0.000000e+00> : vector<2x128xf32>
    %15 = tpu.matmul %10, %9, %cst_15 {dimension_numbers = #tpu.dot_dimension_numbers<[1], [0], [0], [1], [0, 0, 1, 1], [], []>} : vector<2x32xf32>, vector<32x128xf32>, vector<2x128xf32> -> vector<2x128xf32>
    %16 = arith.addf %14, %15 : vector<2x128xf32>
    %17 = vector.extract_strided_slice %16 {offsets = [0, 0], sizes = [2, 32], strides = [1, 1]} : vector<2x128xf32> to vector<2x32xf32>
    %18 = arith.negf %17 : vector<2x32xf32>
    %19 = math.exp %18 : vector<2x32xf32>
    %cst_16 = arith.constant 1.000000e+00 : f32
    %20 = vector.broadcast %cst_16 : f32 to vector<2x32xf32>
    %21 = arith.addf %20, %19 : vector<2x32xf32>
    %22 = arith.divf %20, %21 : vector<2x32xf32>
    %23 = vector.extract_strided_slice %16 {offsets = [0, 32], sizes = [2, 32], strides = [1, 1]} : vector<2x128xf32> to vector<2x32xf32>
    %24 = arith.negf %23 : vector<2x32xf32>
    %25 = math.exp %24 : vector<2x32xf32>
    %cst_17 = arith.constant 1.000000e+00 : f32
    %26 = vector.broadcast %cst_17 : f32 to vector<2x32xf32>
    %27 = arith.addf %26, %25 : vector<2x32xf32>
    %28 = arith.divf %26, %27 : vector<2x32xf32>
    %29 = vector.extract_strided_slice %16 {offsets = [0, 64], sizes = [2, 32], strides = [1, 1]} : vector<2x128xf32> to vector<2x32xf32>
    %30 = math.tanh %29 : vector<2x32xf32>
    %31 = vector.extract_strided_slice %16 {offsets = [0, 96], sizes = [2, 32], strides = [1, 1]} : vector<2x128xf32> to vector<2x32xf32>
    %32 = arith.negf %31 : vector<2x32xf32>
    %33 = math.exp %32 : vector<2x32xf32>
    %cst_18 = arith.constant 1.000000e+00 : f32
    %34 = vector.broadcast %cst_18 : f32 to vector<2x32xf32>
    %35 = arith.addf %34, %33 : vector<2x32xf32>
    %36 = arith.divf %34, %35 : vector<2x32xf32>
    %37 = arith.mulf %28, %11 : vector<2x32xf32>
    %38 = arith.mulf %22, %30 : vector<2x32xf32>
    %39 = arith.addf %37, %38 : vector<2x32xf32>
    %40 = math.tanh %39 : vector<2x32xf32>
    %41 = arith.mulf %36, %40 : vector<2x32xf32>
    %42 = arith.index_cast %c0_i32 : i32 to index
    %c0_19 = arith.constant 0 : index
    %c0_20 = arith.constant 0 : index
    %43 = vector.load %arg11[%42, %c0_19, %c0_20] : memref<8x2x32xf32, #tpu.memory_space<vmem>>, vector<1x2x32xf32>
    %44 = vector.shape_cast %43 : vector<1x2x32xf32> to vector<2x32xf32>
    %45 = vector.shape_cast %41 : vector<2x32xf32> to vector<1x2x32xf32>
    tpu.vector_store %arg11[%42, %c0_19, %c0_20], %45 {strides = array<i32>} : memref<8x2x32xf32, #tpu.memory_space<vmem>>, vector<1x2x32xf32>,
    %c1_i32 = arith.constant 1 : i32
    %46 = arith.index_cast %c1_i32 : i32 to index
    %c0_21 = arith.constant 0 : index
    %c0_22 = arith.constant 0 : index
    %47 = vector.load %arg10[%46, %c0_21, %c0_22] : memref<8x2x128xf32, #tpu.memory_space<vmem>>, vector<1x2x128xf32>
    %48 = vector.shape_cast %47 : vector<1x2x128xf32> to vector<2x128xf32>
    %cst_23 = arith.constant dense<0.000000e+00> : vector<2x128xf32>
    %49 = tpu.matmul %41, %9, %cst_23 {dimension_numbers = #tpu.dot_dimension_numbers<[1], [0], [0], [1], [0, 0, 1, 1], [], []>} : vector<2x32xf32>, vector<32x128xf32>, vector<2x128xf32> -> vector<2x128xf32>
    %50 = arith.addf %48, %49 : vector<2x128xf32>
    %51 = vector.extract_strided_slice %50 {offsets = [0, 0], sizes = [2, 32], strides = [1, 1]} : vector<2x128xf32> to vector<2x32xf32>
    %52 = arith.negf %51 : vector<2x32xf32>
    %53 = math.exp %52 : vector<2x32xf32>
    %cst_24 = arith.constant 1.000000e+00 : f32
    %54 = vector.broadcast %cst_24 : f32 to vector<2x32xf32>
    %55 = arith.addf %54, %53 : vector<2x32xf32>
    %56 = arith.divf %54, %55 : vector<2x32xf32>
    %57 = vector.extract_strided_slice %50 {offsets = [0, 32], sizes = [2, 32], strides = [1, 1]} : vector<2x128xf32> to vector<2x32xf32>
    %58 = arith.negf %57 : vector<2x32xf32>
    %59 = math.exp %58 : vector<2x32xf32>
    %cst_25 = arith.constant 1.000000e+00 : f32
    %60 = vector.broadcast %cst_25 : f32 to vector<2x32xf32>
    %61 = arith.addf %60, %59 : vector<2x32xf32>
    %62 = arith.divf %60, %61 : vector<2x32xf32>
    %63 = vector.extract_strided_slice %50 {offsets = [0, 64], sizes = [2, 32], strides = [1, 1]} : vector<2x128xf32> to vector<2x32xf32>
    %64 = math.tanh %63 : vector<2x32xf32>
    %65 = vector.extract_strided_slice %50 {offsets = [0, 96], sizes = [2, 32], strides = [1, 1]} : vector<2x128xf32> to vector<2x32xf32>
    %66 = arith.negf %65 : vector<2x32xf32>
    %67 = math.exp %66 : vector<2x32xf32>
    %cst_26 = arith.constant 1.000000e+00 : f32
    %68 = vector.broadcast %cst_26 : f32 to vector<2x32xf32>
    %69 = arith.addf %68, %67 : vector<2x32xf32>
    %70 = arith.divf %68, %69 : vector<2x32xf32>
    %71 = arith.mulf %62, %39 : vector<2x32xf32>
    %72 = arith.mulf %56, %64 : vector<2x32xf32>
    %73 = arith.addf %71, %72 : vector<2x32xf32>
    %74 = math.tanh %73 : vector<2x32xf32>
    %75 = arith.mulf %70, %74 : vector<2x32xf32>
    %76 = arith.index_cast %c1_i32 : i32 to index
    %c0_27 = arith.constant 0 : index
    %c0_28 = arith.constant 0 : index
    %77 = vector.load %arg11[%76, %c0_27, %c0_28] : memref<8x2x32xf32, #tpu.memory_space<vmem>>, vector<1x2x32xf32>
    %78 = vector.shape_cast %77 : vector<1x2x32xf32> to vector<2x32xf32>
    %79 = vector.shape_cast %75 : vector<2x32xf32> to vector<1x2x32xf32>
    tpu.vector_store %arg11[%76, %c0_27, %c0_28], %79 {strides = array<i32>} : memref<8x2x32xf32, #tpu.memory_space<vmem>>, vector<1x2x32xf32>,
    %c2_i32 = arith.constant 2 : i32
    %80 = arith.index_cast %c2_i32 : i32 to index
    %c0_29 = arith.constant 0 : index
    %c0_30 = arith.constant 0 : index
    %81 = vector.load %arg10[%80, %c0_29, %c0_30] : memref<8x2x128xf32, #tpu.memory_space<vmem>>, vector<1x2x128xf32>
    %82 = vector.shape_cast %81 : vector<1x2x128xf32> to vector<2x128xf32>
    %cst_31 = arith.constant dense<0.000000e+00> : vector<2x128xf32>
    %83 = tpu.matmul %75, %9, %cst_31 {dimension_numbers = #tpu.dot_dimension_numbers<[1], [0], [0], [1], [0, 0, 1, 1], [], []>} : vector<2x32xf32>, vector<32x128xf32>, vector<2x128xf32> -> vector<2x128xf32>
    %84 = arith.addf %82, %83 : vector<2x128xf32>
    %85 = vector.extract_strided_slice %84 {offsets = [0, 0], sizes = [2, 32], strides = [1, 1]} : vector<2x128xf32> to vector<2x32xf32>
    %86 = arith.negf %85 : vector<2x32xf32>
    %87 = math.exp %86 : vector<2x32xf32>
    %cst_32 = arith.constant 1.000000e+00 : f32
    %88 = vector.broadcast %cst_32 : f32 to vector<2x32xf32>
    %89 = arith.addf %88, %87 : vector<2x32xf32>
    %90 = arith.divf %88, %89 : vector<2x32xf32>
    %91 = vector.extract_strided_slice %84 {offsets = [0, 32], sizes = [2, 32], strides = [1, 1]} : vector<2x128xf32> to vector<2x32xf32>
    %92 = arith.negf %91 : vector<2x32xf32>
    %93 = math.exp %92 : vector<2x32xf32>
    %cst_33 = arith.constant 1.000000e+00 : f32
    %94 = vector.broadcast %cst_33 : f32 to vector<2x32xf32>
    %95 = arith.addf %94, %93 : vector<2x32xf32>
    %96 = arith.divf %94, %95 : vector<2x32xf32>
    %97 = vector.extract_strided_slice %84 {offsets = [0, 64], sizes = [2, 32], strides = [1, 1]} : vector<2x128xf32> to vector<2x32xf32>
    %98 = math.tanh %97 : vector<2x32xf32>
    %99 = vector.extract_strided_slice %84 {offsets = [0, 96], sizes = [2, 32], strides = [1, 1]} : vector<2x128xf32> to vector<2x32xf32>
    %100 = arith.negf %99 : vector<2x32xf32>
    %101 = math.exp %100 : vector<2x32xf32>
    %cst_34 = arith.constant 1.000000e+00 : f32
    %102 = vector.broadcast %cst_34 : f32 to vector<2x32xf32>
    %103 = arith.addf %102, %101 : vector<2x32xf32>
    %104 = arith.divf %102, %103 : vector<2x32xf32>
    %105 = arith.mulf %96, %73 : vector<2x32xf32>
    %106 = arith.mulf %90, %98 : vector<2x32xf32>
    %107 = arith.addf %105, %106 : vector<2x32xf32>
    %108 = math.tanh %107 : vector<2x32xf32>
    %109 = arith.mulf %104, %108 : vector<2x32xf32>
    %110 = arith.index_cast %c2_i32 : i32 to index
    %c0_35 = arith.constant 0 : index
    %c0_36 = arith.constant 0 : index
    %111 = vector.load %arg11[%110, %c0_35, %c0_36] : memref<8x2x32xf32, #tpu.memory_space<vmem>>, vector<1x2x32xf32>
    %112 = vector.shape_cast %111 : vector<1x2x32xf32> to vector<2x32xf32>
    %113 = vector.shape_cast %109 : vector<2x32xf32> to vector<1x2x32xf32>
    tpu.vector_store %arg11[%110, %c0_35, %c0_36], %113 {strides = array<i32>} : memref<8x2x32xf32, #tpu.memory_space<vmem>>, vector<1x2x32xf32>,
    %c3_i32 = arith.constant 3 : i32
    %114 = arith.index_cast %c3_i32 : i32 to index
    %c0_37 = arith.constant 0 : index
    %c0_38 = arith.constant 0 : index
    %115 = vector.load %arg10[%114, %c0_37, %c0_38] : memref<8x2x128xf32, #tpu.memory_space<vmem>>, vector<1x2x128xf32>
    %116 = vector.shape_cast %115 : vector<1x2x128xf32> to vector<2x128xf32>
    %cst_39 = arith.constant dense<0.000000e+00> : vector<2x128xf32>
    %117 = tpu.matmul %109, %9, %cst_39 {dimension_numbers = #tpu.dot_dimension_numbers<[1], [0], [0], [1], [0, 0, 1, 1], [], []>} : vector<2x32xf32>, vector<32x128xf32>, vector<2x128xf32> -> vector<2x128xf32>
    %118 = arith.addf %116, %117 : vector<2x128xf32>
    %119 = vector.extract_strided_slice %118 {offsets = [0, 0], sizes = [2, 32], strides = [1, 1]} : vector<2x128xf32> to vector<2x32xf32>
    %120 = arith.negf %119 : vector<2x32xf32>
    %121 = math.exp %120 : vector<2x32xf32>
    %cst_40 = arith.constant 1.000000e+00 : f32
    %122 = vector.broadcast %cst_40 : f32 to vector<2x32xf32>
    %123 = arith.addf %122, %121 : vector<2x32xf32>
    %124 = arith.divf %122, %123 : vector<2x32xf32>
    %125 = vector.extract_strided_slice %118 {offsets = [0, 32], sizes = [2, 32], strides = [1, 1]} : vector<2x128xf32> to vector<2x32xf32>
    %126 = arith.negf %125 : vector<2x32xf32>
    %127 = math.exp %126 : vector<2x32xf32>
    %cst_41 = arith.constant 1.000000e+00 : f32
    %128 = vector.broadcast %cst_41 : f32 to vector<2x32xf32>
    %129 = arith.addf %128, %127 : vector<2x32xf32>
    %130 = arith.divf %128, %129 : vector<2x32xf32>
    %131 = vector.extract_strided_slice %118 {offsets = [0, 64], sizes = [2, 32], strides = [1, 1]} : vector<2x128xf32> to vector<2x32xf32>
    %132 = math.tanh %131 : vector<2x32xf32>
    %133 = vector.extract_strided_slice %118 {offsets = [0, 96], sizes = [2, 32], strides = [1, 1]} : vector<2x128xf32> to vector<2x32xf32>
    %134 = arith.negf %133 : vector<2x32xf32>
    %135 = math.exp %134 : vector<2x32xf32>
    %cst_42 = arith.constant 1.000000e+00 : f32
    %136 = vector.broadcast %cst_42 : f32 to vector<2x32xf32>
    %137 = arith.addf %136, %135 : vector<2x32xf32>
    %138 = arith.divf %136, %137 : vector<2x32xf32>
    %139 = arith.mulf %130, %107 : vector<2x32xf32>
    %140 = arith.mulf %124, %132 : vector<2x32xf32>
    %141 = arith.addf %139, %140 : vector<2x32xf32>
    %142 = math.tanh %141 : vector<2x32xf32>
    %143 = arith.mulf %138, %142 : vector<2x32xf32>
    %144 = arith.index_cast %c3_i32 : i32 to index
    %c0_43 = arith.constant 0 : index
    %c0_44 = arith.constant 0 : index
    %145 = vector.load %arg11[%144, %c0_43, %c0_44] : memref<8x2x32xf32, #tpu.memory_space<vmem>>, vector<1x2x32xf32>
    %146 = vector.shape_cast %145 : vector<1x2x32xf32> to vector<2x32xf32>
    %147 = vector.shape_cast %143 : vector<2x32xf32> to vector<1x2x32xf32>
    tpu.vector_store %arg11[%144, %c0_43, %c0_44], %147 {strides = array<i32>} : memref<8x2x32xf32, #tpu.memory_space<vmem>>, vector<1x2x32xf32>,
    %c4_i32 = arith.constant 4 : i32
    %148 = arith.index_cast %c4_i32 : i32 to index
    %c0_45 = arith.constant 0 : index
    %c0_46 = arith.constant 0 : index
    %149 = vector.load %arg10[%148, %c0_45, %c0_46] : memref<8x2x128xf32, #tpu.memory_space<vmem>>, vector<1x2x128xf32>
    %150 = vector.shape_cast %149 : vector<1x2x128xf32> to vector<2x128xf32>
    %cst_47 = arith.constant dense<0.000000e+00> : vector<2x128xf32>
    %151 = tpu.matmul %143, %9, %cst_47 {dimension_numbers = #tpu.dot_dimension_numbers<[1], [0], [0], [1], [0, 0, 1, 1], [], []>} : vector<2x32xf32>, vector<32x128xf32>, vector<2x128xf32> -> vector<2x128xf32>
    %152 = arith.addf %150, %151 : vector<2x128xf32>
    %153 = vector.extract_strided_slice %152 {offsets = [0, 0], sizes = [2, 32], strides = [1, 1]} : vector<2x128xf32> to vector<2x32xf32>
    %154 = arith.negf %153 : vector<2x32xf32>
    %155 = math.exp %154 : vector<2x32xf32>
    %cst_48 = arith.constant 1.000000e+00 : f32
    %156 = vector.broadcast %cst_48 : f32 to vector<2x32xf32>
    %157 = arith.addf %156, %155 : vector<2x32xf32>
    %158 = arith.divf %156, %157 : vector<2x32xf32>
    %159 = vector.extract_strided_slice %152 {offsets = [0, 32], sizes = [2, 32], strides = [1, 1]} : vector<2x128xf32> to vector<2x32xf32>
    %160 = arith.negf %159 : vector<2x32xf32>
    %161 = math.exp %160 : vector<2x32xf32>
    %cst_49 = arith.constant 1.000000e+00 : f32
    %162 = vector.broadcast %cst_49 : f32 to vector<2x32xf32>
    %163 = arith.addf %162, %161 : vector<2x32xf32>
    %164 = arith.divf %162, %163 : vector<2x32xf32>
    %165 = vector.extract_strided_slice %152 {offsets = [0, 64], sizes = [2, 32], strides = [1, 1]} : vector<2x128xf32> to vector<2x32xf32>
    %166 = math.tanh %165 : vector<2x32xf32>
    %167 = vector.extract_strided_slice %152 {offsets = [0, 96], sizes = [2, 32], strides = [1, 1]} : vector<2x128xf32> to vector<2x32xf32>
    %168 = arith.negf %167 : vector<2x32xf32>
    %169 = math.exp %168 : vector<2x32xf32>
    %cst_50 = arith.constant 1.000000e+00 : f32
    %170 = vector.broadcast %cst_50 : f32 to vector<2x32xf32>
    %171 = arith.addf %170, %169 : vector<2x32xf32>
    %172 = arith.divf %170, %171 : vector<2x32xf32>
    %173 = arith.mulf %164, %141 : vector<2x32xf32>
    %174 = arith.mulf %158, %166 : vector<2x32xf32>
    %175 = arith.addf %173, %174 : vector<2x32xf32>
    %176 = math.tanh %175 : vector<2x32xf32>
    %177 = arith.mulf %172, %176 : vector<2x32xf32>
    %178 = arith.index_cast %c4_i32 : i32 to index
    %c0_51 = arith.constant 0 : index
    %c0_52 = arith.constant 0 : index
    %179 = vector.load %arg11[%178, %c0_51, %c0_52] : memref<8x2x32xf32, #tpu.memory_space<vmem>>, vector<1x2x32xf32>
    %180 = vector.shape_cast %179 : vector<1x2x32xf32> to vector<2x32xf32>
    %181 = vector.shape_cast %177 : vector<2x32xf32> to vector<1x2x32xf32>
    tpu.vector_store %arg11[%178, %c0_51, %c0_52], %181 {strides = array<i32>} : memref<8x2x32xf32, #tpu.memory_space<vmem>>, vector<1x2x32xf32>,
    %c5_i32 = arith.constant 5 : i32
    %182 = arith.index_cast %c5_i32 : i32 to index
    %c0_53 = arith.constant 0 : index
    %c0_54 = arith.constant 0 : index
    %183 = vector.load %arg10[%182, %c0_53, %c0_54] : memref<8x2x128xf32, #tpu.memory_space<vmem>>, vector<1x2x128xf32>
    %184 = vector.shape_cast %183 : vector<1x2x128xf32> to vector<2x128xf32>
    %cst_55 = arith.constant dense<0.000000e+00> : vector<2x128xf32>
    %185 = tpu.matmul %177, %9, %cst_55 {dimension_numbers = #tpu.dot_dimension_numbers<[1], [0], [0], [1], [0, 0, 1, 1], [], []>} : vector<2x32xf32>, vector<32x128xf32>, vector<2x128xf32> -> vector<2x128xf32>
    %186 = arith.addf %184, %185 : vector<2x128xf32>
    %187 = vector.extract_strided_slice %186 {offsets = [0, 0], sizes = [2, 32], strides = [1, 1]} : vector<2x128xf32> to vector<2x32xf32>
    %188 = arith.negf %187 : vector<2x32xf32>
    %189 = math.exp %188 : vector<2x32xf32>
    %cst_56 = arith.constant 1.000000e+00 : f32
    %190 = vector.broadcast %cst_56 : f32 to vector<2x32xf32>
    %191 = arith.addf %190, %189 : vector<2x32xf32>
    %192 = arith.divf %190, %191 : vector<2x32xf32>
    %193 = vector.extract_strided_slice %186 {offsets = [0, 32], sizes = [2, 32], strides = [1, 1]} : vector<2x128xf32> to vector<2x32xf32>
    %194 = arith.negf %193 : vector<2x32xf32>
    %195 = math.exp %194 : vector<2x32xf32>
    %cst_57 = arith.constant 1.000000e+00 : f32
    %196 = vector.broadcast %cst_57 : f32 to vector<2x32xf32>
    %197 = arith.addf %196, %195 : vector<2x32xf32>
    %198 = arith.divf %196, %197 : vector<2x32xf32>
    %199 = vector.extract_strided_slice %186 {offsets = [0, 64], sizes = [2, 32], strides = [1, 1]} : vector<2x128xf32> to vector<2x32xf32>
    %200 = math.tanh %199 : vector<2x32xf32>
    %201 = vector.extract_strided_slice %186 {offsets = [0, 96], sizes = [2, 32], strides = [1, 1]} : vector<2x128xf32> to vector<2x32xf32>
    %202 = arith.negf %201 : vector<2x32xf32>
    %203 = math.exp %202 : vector<2x32xf32>
    %cst_58 = arith.constant 1.000000e+00 : f32
    %204 = vector.broadcast %cst_58 : f32 to vector<2x32xf32>
    %205 = arith.addf %204, %203 : vector<2x32xf32>
    %206 = arith.divf %204, %205 : vector<2x32xf32>
    %207 = arith.mulf %198, %175 : vector<2x32xf32>
    %208 = arith.mulf %192, %200 : vector<2x32xf32>
    %209 = arith.addf %207, %208 : vector<2x32xf32>
    %210 = math.tanh %209 : vector<2x32xf32>
    %211 = arith.mulf %206, %210 : vector<2x32xf32>
    %212 = arith.index_cast %c5_i32 : i32 to index
    %c0_59 = arith.constant 0 : index
    %c0_60 = arith.constant 0 : index
    %213 = vector.load %arg11[%212, %c0_59, %c0_60] : memref<8x2x32xf32, #tpu.memory_space<vmem>>, vector<1x2x32xf32>
    %214 = vector.shape_cast %213 : vector<1x2x32xf32> to vector<2x32xf32>
    %215 = vector.shape_cast %211 : vector<2x32xf32> to vector<1x2x32xf32>
    tpu.vector_store %arg11[%212, %c0_59, %c0_60], %215 {strides = array<i32>} : memref<8x2x32xf32, #tpu.memory_space<vmem>>, vector<1x2x32xf32>,
    %c6_i32 = arith.constant 6 : i32
    %216 = arith.index_cast %c6_i32 : i32 to index
    %c0_61 = arith.constant 0 : index
    %c0_62 = arith.constant 0 : index
    %217 = vector.load %arg10[%216, %c0_61, %c0_62] : memref<8x2x128xf32, #tpu.memory_space<vmem>>, vector<1x2x128xf32>
    %218 = vector.shape_cast %217 : vector<1x2x128xf32> to vector<2x128xf32>
    %cst_63 = arith.constant dense<0.000000e+00> : vector<2x128xf32>
    %219 = tpu.matmul %211, %9, %cst_63 {dimension_numbers = #tpu.dot_dimension_numbers<[1], [0], [0], [1], [0, 0, 1, 1], [], []>} : vector<2x32xf32>, vector<32x128xf32>, vector<2x128xf32> -> vector<2x128xf32>
    %220 = arith.addf %218, %219 : vector<2x128xf32>
    %221 = vector.extract_strided_slice %220 {offsets = [0, 0], sizes = [2, 32], strides = [1, 1]} : vector<2x128xf32> to vector<2x32xf32>
    %222 = arith.negf %221 : vector<2x32xf32>
    %223 = math.exp %222 : vector<2x32xf32>
    %cst_64 = arith.constant 1.000000e+00 : f32
    %224 = vector.broadcast %cst_64 : f32 to vector<2x32xf32>
    %225 = arith.addf %224, %223 : vector<2x32xf32>
    %226 = arith.divf %224, %225 : vector<2x32xf32>
    %227 = vector.extract_strided_slice %220 {offsets = [0, 32], sizes = [2, 32], strides = [1, 1]} : vector<2x128xf32> to vector<2x32xf32>
    %228 = arith.negf %227 : vector<2x32xf32>
    %229 = math.exp %228 : vector<2x32xf32>
    %cst_65 = arith.constant 1.000000e+00 : f32
    %230 = vector.broadcast %cst_65 : f32 to vector<2x32xf32>
    %231 = arith.addf %230, %229 : vector<2x32xf32>
    %232 = arith.divf %230, %231 : vector<2x32xf32>
    %233 = vector.extract_strided_slice %220 {offsets = [0, 64], sizes = [2, 32], strides = [1, 1]} : vector<2x128xf32> to vector<2x32xf32>
    %234 = math.tanh %233 : vector<2x32xf32>
    %235 = vector.extract_strided_slice %220 {offsets = [0, 96], sizes = [2, 32], strides = [1, 1]} : vector<2x128xf32> to vector<2x32xf32>
    %236 = arith.negf %235 : vector<2x32xf32>
    %237 = math.exp %236 : vector<2x32xf32>
    %cst_66 = arith.constant 1.000000e+00 : f32
    %238 = vector.broadcast %cst_66 : f32 to vector<2x32xf32>
    %239 = arith.addf %238, %237 : vector<2x32xf32>
    %240 = arith.divf %238, %239 : vector<2x32xf32>
    %241 = arith.mulf %232, %209 : vector<2x32xf32>
    %242 = arith.mulf %226, %234 : vector<2x32xf32>
    %243 = arith.addf %241, %242 : vector<2x32xf32>
    %244 = math.tanh %243 : vector<2x32xf32>
    %245 = arith.mulf %240, %244 : vector<2x32xf32>
    %246 = arith.index_cast %c6_i32 : i32 to index
    %c0_67 = arith.constant 0 : index
    %c0_68 = arith.constant 0 : index
    %247 = vector.load %arg11[%246, %c0_67, %c0_68] : memref<8x2x32xf32, #tpu.memory_space<vmem>>, vector<1x2x32xf32>
    %248 = vector.shape_cast %247 : vector<1x2x32xf32> to vector<2x32xf32>
    %249 = vector.shape_cast %245 : vector<2x32xf32> to vector<1x2x32xf32>
    tpu.vector_store %arg11[%246, %c0_67, %c0_68], %249 {strides = array<i32>} : memref<8x2x32xf32, #tpu.memory_space<vmem>>, vector<1x2x32xf32>,
    %c7_i32 = arith.constant 7 : i32
    %250 = arith.index_cast %c7_i32 : i32 to index
    %c0_69 = arith.constant 0 : index
    %c0_70 = arith.constant 0 : index
    %251 = vector.load %arg10[%250, %c0_69, %c0_70] : memref<8x2x128xf32, #tpu.memory_space<vmem>>, vector<1x2x128xf32>
    %252 = vector.shape_cast %251 : vector<1x2x128xf32> to vector<2x128xf32>
    %cst_71 = arith.constant dense<0.000000e+00> : vector<2x128xf32>
    %253 = tpu.matmul %245, %9, %cst_71 {dimension_numbers = #tpu.dot_dimension_numbers<[1], [0], [0], [1], [0, 0, 1, 1], [], []>} : vector<2x32xf32>, vector<32x128xf32>, vector<2x128xf32> -> vector<2x128xf32>
    %254 = arith.addf %252, %253 : vector<2x128xf32>
    %255 = vector.extract_strided_slice %254 {offsets = [0, 0], sizes = [2, 32], strides = [1, 1]} : vector<2x128xf32> to vector<2x32xf32>
    %256 = arith.negf %255 : vector<2x32xf32>
    %257 = math.exp %256 : vector<2x32xf32>
    %cst_72 = arith.constant 1.000000e+00 : f32
    %258 = vector.broadcast %cst_72 : f32 to vector<2x32xf32>
    %259 = arith.addf %258, %257 : vector<2x32xf32>
    %260 = arith.divf %258, %259 : vector<2x32xf32>
    %261 = vector.extract_strided_slice %254 {offsets = [0, 32], sizes = [2, 32], strides = [1, 1]} : vector<2x128xf32> to vector<2x32xf32>
    %262 = arith.negf %261 : vector<2x32xf32>
    %263 = math.exp %262 : vector<2x32xf32>
    %cst_73 = arith.constant 1.000000e+00 : f32
    %264 = vector.broadcast %cst_73 : f32 to vector<2x32xf32>
    %265 = arith.addf %264, %263 : vector<2x32xf32>
    %266 = arith.divf %264, %265 : vector<2x32xf32>
    %267 = vector.extract_strided_slice %254 {offsets = [0, 64], sizes = [2, 32], strides = [1, 1]} : vector<2x128xf32> to vector<2x32xf32>
    %268 = math.tanh %267 : vector<2x32xf32>
    %269 = vector.extract_strided_slice %254 {offsets = [0, 96], sizes = [2, 32], strides = [1, 1]} : vector<2x128xf32> to vector<2x32xf32>
    %270 = arith.negf %269 : vector<2x32xf32>
    %271 = math.exp %270 : vector<2x32xf32>
    %cst_74 = arith.constant 1.000000e+00 : f32
    %272 = vector.broadcast %cst_74 : f32 to vector<2x32xf32>
    %273 = arith.addf %272, %271 : vector<2x32xf32>
    %274 = arith.divf %272, %273 : vector<2x32xf32>
    %275 = arith.mulf %266, %243 : vector<2x32xf32>
    %276 = arith.mulf %260, %268 : vector<2x32xf32>
    %277 = arith.addf %275, %276 : vector<2x32xf32>
    %278 = math.tanh %277 : vector<2x32xf32>
    %279 = arith.mulf %274, %278 : vector<2x32xf32>
    %280 = arith.index_cast %c7_i32 : i32 to index
    %c0_75 = arith.constant 0 : index
    %c0_76 = arith.constant 0 : index
    %281 = vector.load %arg11[%280, %c0_75, %c0_76] : memref<8x2x32xf32, #tpu.memory_space<vmem>>, vector<1x2x32xf32>
    %282 = vector.shape_cast %281 : vector<1x2x32xf32> to vector<2x32xf32>
    %283 = vector.shape_cast %279 : vector<2x32xf32> to vector<1x2x32xf32>
    tpu.vector_store %arg11[%280, %c0_75, %c0_76], %283 {strides = array<i32>} : memref<8x2x32xf32, #tpu.memory_space<vmem>>, vector<1x2x32xf32>,
    %c8_i32 = arith.constant 8 : i32
    %c0_77 = arith.constant 0 : index
    %c0_78 = arith.constant 0 : index
    %c0_79 = arith.constant 0 : index
    %284 = vector.load %arg11[%c0_77, %c0_78, %c0_79] : memref<8x2x32xf32, #tpu.memory_space<vmem>>, vector<8x2x32xf32>
    %285 = vector.shape_cast %284 : vector<8x2x32xf32> to vector<16x32xf32>
    %c0_80 = arith.constant 0 : index
    %c0_81 = arith.constant 0 : index
    %286 = vector.load %arg4[%c0_80, %c0_81] : memref<32x128xf32, #tpu.memory_space<vmem>>, vector<32x128xf32>
    %cst_82 = arith.constant dense<0.000000e+00> : vector<16x128xf32>
    %287 = tpu.matmul %285, %286, %cst_82 {dimension_numbers = #tpu.dot_dimension_numbers<[1], [0], [0], [1], [0, 0, 1, 1], [], []>} : vector<16x32xf32>, vector<32x128xf32>, vector<16x128xf32> -> vector<16x128xf32>
    %c0_83 = arith.constant 0 : index
    %c0_84 = arith.constant 0 : index
    %288 = vector.load %arg6[%c0_83, %c0_84] : memref<1x128xf32, #tpu.memory_space<vmem>>, vector<1x128xf32>
    %289 = vector.broadcast %288 : vector<1x128xf32> to vector<16x128xf32>
    %290 = arith.addf %287, %289 : vector<16x128xf32>
    %291 = vector.shape_cast %290 : vector<16x128xf32> to vector<8x2x128xf32>
    %c0_85 = arith.constant 0 : index
    %c0_86 = arith.constant 0 : index
    %c0_87 = arith.constant 0 : index
    %292 = vector.load %arg10[%c0_85, %c0_86, %c0_87] : memref<8x2x128xf32, #tpu.memory_space<vmem>>, vector<8x2x128xf32>
    tpu.vector_store %arg10[%c0_85, %c0_86, %c0_87], %291 {strides = array<i32>} : memref<8x2x128xf32, #tpu.memory_space<vmem>>, vector<8x2x128xf32>,
    %c0_88 = arith.constant 0 : index
    %c0_89 = arith.constant 0 : index
    %293 = vector.load %arg5[%c0_88, %c0_89] : memref<32x128xf32, #tpu.memory_space<vmem>>, vector<32x128xf32>
    %cst_90 = arith.constant 0.000000e+00 : f32
    %294 = vector.broadcast %cst_90 : f32 to vector<2x32xf32>
    %cst_91 = arith.constant 0.000000e+00 : f32
    %295 = vector.broadcast %cst_91 : f32 to vector<2x32xf32>
    %c0_i32_92 = arith.constant 0 : i32
    %296 = arith.index_cast %c0_i32_92 : i32 to index
    %c0_93 = arith.constant 0 : index
    %c0_94 = arith.constant 0 : index
    %297 = vector.load %arg10[%296, %c0_93, %c0_94] : memref<8x2x128xf32, #tpu.memory_space<vmem>>, vector<1x2x128xf32>
    %298 = vector.shape_cast %297 : vector<1x2x128xf32> to vector<2x128xf32>
    %cst_95 = arith.constant dense<0.000000e+00> : vector<2x128xf32>
    %299 = tpu.matmul %294, %293, %cst_95 {dimension_numbers = #tpu.dot_dimension_numbers<[1], [0], [0], [1], [0, 0, 1, 1], [], []>} : vector<2x32xf32>, vector<32x128xf32>, vector<2x128xf32> -> vector<2x128xf32>
    %300 = arith.addf %298, %299 : vector<2x128xf32>
    %301 = vector.extract_strided_slice %300 {offsets = [0, 0], sizes = [2, 32], strides = [1, 1]} : vector<2x128xf32> to vector<2x32xf32>
    %302 = arith.negf %301 : vector<2x32xf32>
    %303 = math.exp %302 : vector<2x32xf32>
    %cst_96 = arith.constant 1.000000e+00 : f32
    %304 = vector.broadcast %cst_96 : f32 to vector<2x32xf32>
    %305 = arith.addf %304, %303 : vector<2x32xf32>
    %306 = arith.divf %304, %305 : vector<2x32xf32>
    %307 = vector.extract_strided_slice %300 {offsets = [0, 32], sizes = [2, 32], strides = [1, 1]} : vector<2x128xf32> to vector<2x32xf32>
    %308 = arith.negf %307 : vector<2x32xf32>
    %309 = math.exp %308 : vector<2x32xf32>
    %cst_97 = arith.constant 1.000000e+00 : f32
    %310 = vector.broadcast %cst_97 : f32 to vector<2x32xf32>
    %311 = arith.addf %310, %309 : vector<2x32xf32>
    %312 = arith.divf %310, %311 : vector<2x32xf32>
    %313 = vector.extract_strided_slice %300 {offsets = [0, 64], sizes = [2, 32], strides = [1, 1]} : vector<2x128xf32> to vector<2x32xf32>
    %314 = math.tanh %313 : vector<2x32xf32>
    %315 = vector.extract_strided_slice %300 {offsets = [0, 96], sizes = [2, 32], strides = [1, 1]} : vector<2x128xf32> to vector<2x32xf32>
    %316 = arith.negf %315 : vector<2x32xf32>
    %317 = math.exp %316 : vector<2x32xf32>
    %cst_98 = arith.constant 1.000000e+00 : f32
    %318 = vector.broadcast %cst_98 : f32 to vector<2x32xf32>
    %319 = arith.addf %318, %317 : vector<2x32xf32>
    %320 = arith.divf %318, %319 : vector<2x32xf32>
    %321 = arith.mulf %312, %295 : vector<2x32xf32>
    %322 = arith.mulf %306, %314 : vector<2x32xf32>
    %323 = arith.addf %321, %322 : vector<2x32xf32>
    %324 = math.tanh %323 : vector<2x32xf32>
    %325 = arith.mulf %320, %324 : vector<2x32xf32>
    %c1_i32_99 = arith.constant 1 : i32
    %326 = arith.index_cast %c1_i32_99 : i32 to index
    %c0_100 = arith.constant 0 : index
    %c0_101 = arith.constant 0 : index
    %327 = vector.load %arg10[%326, %c0_100, %c0_101] : memref<8x2x128xf32, #tpu.memory_space<vmem>>, vector<1x2x128xf32>
    %328 = vector.shape_cast %327 : vector<1x2x128xf32> to vector<2x128xf32>
    %cst_102 = arith.constant dense<0.000000e+00> : vector<2x128xf32>
    %329 = tpu.matmul %325, %293, %cst_102 {dimension_numbers = #tpu.dot_dimension_numbers<[1], [0], [0], [1], [0, 0, 1, 1], [], []>} : vector<2x32xf32>, vector<32x128xf32>, vector<2x128xf32> -> vector<2x128xf32>
    %330 = arith.addf %328, %329 : vector<2x128xf32>
    %331 = vector.extract_strided_slice %330 {offsets = [0, 0], sizes = [2, 32], strides = [1, 1]} : vector<2x128xf32> to vector<2x32xf32>
    %332 = arith.negf %331 : vector<2x32xf32>
    %333 = math.exp %332 : vector<2x32xf32>
    %cst_103 = arith.constant 1.000000e+00 : f32
    %334 = vector.broadcast %cst_103 : f32 to vector<2x32xf32>
    %335 = arith.addf %334, %333 : vector<2x32xf32>
    %336 = arith.divf %334, %335 : vector<2x32xf32>
    %337 = vector.extract_strided_slice %330 {offsets = [0, 32], sizes = [2, 32], strides = [1, 1]} : vector<2x128xf32> to vector<2x32xf32>
    %338 = arith.negf %337 : vector<2x32xf32>
    %339 = math.exp %338 : vector<2x32xf32>
    %cst_104 = arith.constant 1.000000e+00 : f32
    %340 = vector.broadcast %cst_104 : f32 to vector<2x32xf32>
    %341 = arith.addf %340, %339 : vector<2x32xf32>
    %342 = arith.divf %340, %341 : vector<2x32xf32>
    %343 = vector.extract_strided_slice %330 {offsets = [0, 64], sizes = [2, 32], strides = [1, 1]} : vector<2x128xf32> to vector<2x32xf32>
    %344 = math.tanh %343 : vector<2x32xf32>
    %345 = vector.extract_strided_slice %330 {offsets = [0, 96], sizes = [2, 32], strides = [1, 1]} : vector<2x128xf32> to vector<2x32xf32>
    %346 = arith.negf %345 : vector<2x32xf32>
    %347 = math.exp %346 : vector<2x32xf32>
    %cst_105 = arith.constant 1.000000e+00 : f32
    %348 = vector.broadcast %cst_105 : f32 to vector<2x32xf32>
    %349 = arith.addf %348, %347 : vector<2x32xf32>
    %350 = arith.divf %348, %349 : vector<2x32xf32>
    %351 = arith.mulf %342, %323 : vector<2x32xf32>
    %352 = arith.mulf %336, %344 : vector<2x32xf32>
    %353 = arith.addf %351, %352 : vector<2x32xf32>
    %354 = math.tanh %353 : vector<2x32xf32>
    %355 = arith.mulf %350, %354 : vector<2x32xf32>
    %c2_i32_106 = arith.constant 2 : i32
    %356 = arith.index_cast %c2_i32_106 : i32 to index
    %c0_107 = arith.constant 0 : index
    %c0_108 = arith.constant 0 : index
    %357 = vector.load %arg10[%356, %c0_107, %c0_108] : memref<8x2x128xf32, #tpu.memory_space<vmem>>, vector<1x2x128xf32>
    %358 = vector.shape_cast %357 : vector<1x2x128xf32> to vector<2x128xf32>
    %cst_109 = arith.constant dense<0.000000e+00> : vector<2x128xf32>
    %359 = tpu.matmul %355, %293, %cst_109 {dimension_numbers = #tpu.dot_dimension_numbers<[1], [0], [0], [1], [0, 0, 1, 1], [], []>} : vector<2x32xf32>, vector<32x128xf32>, vector<2x128xf32> -> vector<2x128xf32>
    %360 = arith.addf %358, %359 : vector<2x128xf32>
    %361 = vector.extract_strided_slice %360 {offsets = [0, 0], sizes = [2, 32], strides = [1, 1]} : vector<2x128xf32> to vector<2x32xf32>
    %362 = arith.negf %361 : vector<2x32xf32>
    %363 = math.exp %362 : vector<2x32xf32>
    %cst_110 = arith.constant 1.000000e+00 : f32
    %364 = vector.broadcast %cst_110 : f32 to vector<2x32xf32>
    %365 = arith.addf %364, %363 : vector<2x32xf32>
    %366 = arith.divf %364, %365 : vector<2x32xf32>
    %367 = vector.extract_strided_slice %360 {offsets = [0, 32], sizes = [2, 32], strides = [1, 1]} : vector<2x128xf32> to vector<2x32xf32>
    %368 = arith.negf %367 : vector<2x32xf32>
    %369 = math.exp %368 : vector<2x32xf32>
    %cst_111 = arith.constant 1.000000e+00 : f32
    %370 = vector.broadcast %cst_111 : f32 to vector<2x32xf32>
    %371 = arith.addf %370, %369 : vector<2x32xf32>
    %372 = arith.divf %370, %371 : vector<2x32xf32>
    %373 = vector.extract_strided_slice %360 {offsets = [0, 64], sizes = [2, 32], strides = [1, 1]} : vector<2x128xf32> to vector<2x32xf32>
    %374 = math.tanh %373 : vector<2x32xf32>
    %375 = vector.extract_strided_slice %360 {offsets = [0, 96], sizes = [2, 32], strides = [1, 1]} : vector<2x128xf32> to vector<2x32xf32>
    %376 = arith.negf %375 : vector<2x32xf32>
    %377 = math.exp %376 : vector<2x32xf32>
    %cst_112 = arith.constant 1.000000e+00 : f32
    %378 = vector.broadcast %cst_112 : f32 to vector<2x32xf32>
    %379 = arith.addf %378, %377 : vector<2x32xf32>
    %380 = arith.divf %378, %379 : vector<2x32xf32>
    %381 = arith.mulf %372, %353 : vector<2x32xf32>
    %382 = arith.mulf %366, %374 : vector<2x32xf32>
    %383 = arith.addf %381, %382 : vector<2x32xf32>
    %384 = math.tanh %383 : vector<2x32xf32>
    %385 = arith.mulf %380, %384 : vector<2x32xf32>
    %c3_i32_113 = arith.constant 3 : i32
    %386 = arith.index_cast %c3_i32_113 : i32 to index
    %c0_114 = arith.constant 0 : index
    %c0_115 = arith.constant 0 : index
    %387 = vector.load %arg10[%386, %c0_114, %c0_115] : memref<8x2x128xf32, #tpu.memory_space<vmem>>, vector<1x2x128xf32>
    %388 = vector.shape_cast %387 : vector<1x2x128xf32> to vector<2x128xf32>
    %cst_116 = arith.constant dense<0.000000e+00> : vector<2x128xf32>
    %389 = tpu.matmul %385, %293, %cst_116 {dimension_numbers = #tpu.dot_dimension_numbers<[1], [0], [0], [1], [0, 0, 1, 1], [], []>} : vector<2x32xf32>, vector<32x128xf32>, vector<2x128xf32> -> vector<2x128xf32>
    %390 = arith.addf %388, %389 : vector<2x128xf32>
    %391 = vector.extract_strided_slice %390 {offsets = [0, 0], sizes = [2, 32], strides = [1, 1]} : vector<2x128xf32> to vector<2x32xf32>
    %392 = arith.negf %391 : vector<2x32xf32>
    %393 = math.exp %392 : vector<2x32xf32>
    %cst_117 = arith.constant 1.000000e+00 : f32
    %394 = vector.broadcast %cst_117 : f32 to vector<2x32xf32>
    %395 = arith.addf %394, %393 : vector<2x32xf32>
    %396 = arith.divf %394, %395 : vector<2x32xf32>
    %397 = vector.extract_strided_slice %390 {offsets = [0, 32], sizes = [2, 32], strides = [1, 1]} : vector<2x128xf32> to vector<2x32xf32>
    %398 = arith.negf %397 : vector<2x32xf32>
    %399 = math.exp %398 : vector<2x32xf32>
    %cst_118 = arith.constant 1.000000e+00 : f32
    %400 = vector.broadcast %cst_118 : f32 to vector<2x32xf32>
    %401 = arith.addf %400, %399 : vector<2x32xf32>
    %402 = arith.divf %400, %401 : vector<2x32xf32>
    %403 = vector.extract_strided_slice %390 {offsets = [0, 64], sizes = [2, 32], strides = [1, 1]} : vector<2x128xf32> to vector<2x32xf32>
    %404 = math.tanh %403 : vector<2x32xf32>
    %405 = vector.extract_strided_slice %390 {offsets = [0, 96], sizes = [2, 32], strides = [1, 1]} : vector<2x128xf32> to vector<2x32xf32>
    %406 = arith.negf %405 : vector<2x32xf32>
    %407 = math.exp %406 : vector<2x32xf32>
    %cst_119 = arith.constant 1.000000e+00 : f32
    %408 = vector.broadcast %cst_119 : f32 to vector<2x32xf32>
    %409 = arith.addf %408, %407 : vector<2x32xf32>
    %410 = arith.divf %408, %409 : vector<2x32xf32>
    %411 = arith.mulf %402, %383 : vector<2x32xf32>
    %412 = arith.mulf %396, %404 : vector<2x32xf32>
    %413 = arith.addf %411, %412 : vector<2x32xf32>
    %414 = math.tanh %413 : vector<2x32xf32>
    %415 = arith.mulf %410, %414 : vector<2x32xf32>
    %c4_i32_120 = arith.constant 4 : i32
    %416 = arith.index_cast %c4_i32_120 : i32 to index
    %c0_121 = arith.constant 0 : index
    %c0_122 = arith.constant 0 : index
    %417 = vector.load %arg10[%416, %c0_121, %c0_122] : memref<8x2x128xf32, #tpu.memory_space<vmem>>, vector<1x2x128xf32>
    %418 = vector.shape_cast %417 : vector<1x2x128xf32> to vector<2x128xf32>
    %cst_123 = arith.constant dense<0.000000e+00> : vector<2x128xf32>
    %419 = tpu.matmul %415, %293, %cst_123 {dimension_numbers = #tpu.dot_dimension_numbers<[1], [0], [0], [1], [0, 0, 1, 1], [], []>} : vector<2x32xf32>, vector<32x128xf32>, vector<2x128xf32> -> vector<2x128xf32>
    %420 = arith.addf %418, %419 : vector<2x128xf32>
    %421 = vector.extract_strided_slice %420 {offsets = [0, 0], sizes = [2, 32], strides = [1, 1]} : vector<2x128xf32> to vector<2x32xf32>
    %422 = arith.negf %421 : vector<2x32xf32>
    %423 = math.exp %422 : vector<2x32xf32>
    %cst_124 = arith.constant 1.000000e+00 : f32
    %424 = vector.broadcast %cst_124 : f32 to vector<2x32xf32>
    %425 = arith.addf %424, %423 : vector<2x32xf32>
    %426 = arith.divf %424, %425 : vector<2x32xf32>
    %427 = vector.extract_strided_slice %420 {offsets = [0, 32], sizes = [2, 32], strides = [1, 1]} : vector<2x128xf32> to vector<2x32xf32>
    %428 = arith.negf %427 : vector<2x32xf32>
    %429 = math.exp %428 : vector<2x32xf32>
    %cst_125 = arith.constant 1.000000e+00 : f32
    %430 = vector.broadcast %cst_125 : f32 to vector<2x32xf32>
    %431 = arith.addf %430, %429 : vector<2x32xf32>
    %432 = arith.divf %430, %431 : vector<2x32xf32>
    %433 = vector.extract_strided_slice %420 {offsets = [0, 64], sizes = [2, 32], strides = [1, 1]} : vector<2x128xf32> to vector<2x32xf32>
    %434 = math.tanh %433 : vector<2x32xf32>
    %435 = vector.extract_strided_slice %420 {offsets = [0, 96], sizes = [2, 32], strides = [1, 1]} : vector<2x128xf32> to vector<2x32xf32>
    %436 = arith.negf %435 : vector<2x32xf32>
    %437 = math.exp %436 : vector<2x32xf32>
    %cst_126 = arith.constant 1.000000e+00 : f32
    %438 = vector.broadcast %cst_126 : f32 to vector<2x32xf32>
    %439 = arith.addf %438, %437 : vector<2x32xf32>
    %440 = arith.divf %438, %439 : vector<2x32xf32>
    %441 = arith.mulf %432, %413 : vector<2x32xf32>
    %442 = arith.mulf %426, %434 : vector<2x32xf32>
    %443 = arith.addf %441, %442 : vector<2x32xf32>
    %444 = math.tanh %443 : vector<2x32xf32>
    %445 = arith.mulf %440, %444 : vector<2x32xf32>
    %c5_i32_127 = arith.constant 5 : i32
    %446 = arith.index_cast %c5_i32_127 : i32 to index
    %c0_128 = arith.constant 0 : index
    %c0_129 = arith.constant 0 : index
    %447 = vector.load %arg10[%446, %c0_128, %c0_129] : memref<8x2x128xf32, #tpu.memory_space<vmem>>, vector<1x2x128xf32>
    %448 = vector.shape_cast %447 : vector<1x2x128xf32> to vector<2x128xf32>
    %cst_130 = arith.constant dense<0.000000e+00> : vector<2x128xf32>
    %449 = tpu.matmul %445, %293, %cst_130 {dimension_numbers = #tpu.dot_dimension_numbers<[1], [0], [0], [1], [0, 0, 1, 1], [], []>} : vector<2x32xf32>, vector<32x128xf32>, vector<2x128xf32> -> vector<2x128xf32>
    %450 = arith.addf %448, %449 : vector<2x128xf32>
    %451 = vector.extract_strided_slice %450 {offsets = [0, 0], sizes = [2, 32], strides = [1, 1]} : vector<2x128xf32> to vector<2x32xf32>
    %452 = arith.negf %451 : vector<2x32xf32>
    %453 = math.exp %452 : vector<2x32xf32>
    %cst_131 = arith.constant 1.000000e+00 : f32
    %454 = vector.broadcast %cst_131 : f32 to vector<2x32xf32>
    %455 = arith.addf %454, %453 : vector<2x32xf32>
    %456 = arith.divf %454, %455 : vector<2x32xf32>
    %457 = vector.extract_strided_slice %450 {offsets = [0, 32], sizes = [2, 32], strides = [1, 1]} : vector<2x128xf32> to vector<2x32xf32>
    %458 = arith.negf %457 : vector<2x32xf32>
    %459 = math.exp %458 : vector<2x32xf32>
    %cst_132 = arith.constant 1.000000e+00 : f32
    %460 = vector.broadcast %cst_132 : f32 to vector<2x32xf32>
    %461 = arith.addf %460, %459 : vector<2x32xf32>
    %462 = arith.divf %460, %461 : vector<2x32xf32>
    %463 = vector.extract_strided_slice %450 {offsets = [0, 64], sizes = [2, 32], strides = [1, 1]} : vector<2x128xf32> to vector<2x32xf32>
    %464 = math.tanh %463 : vector<2x32xf32>
    %465 = vector.extract_strided_slice %450 {offsets = [0, 96], sizes = [2, 32], strides = [1, 1]} : vector<2x128xf32> to vector<2x32xf32>
    %466 = arith.negf %465 : vector<2x32xf32>
    %467 = math.exp %466 : vector<2x32xf32>
    %cst_133 = arith.constant 1.000000e+00 : f32
    %468 = vector.broadcast %cst_133 : f32 to vector<2x32xf32>
    %469 = arith.addf %468, %467 : vector<2x32xf32>
    %470 = arith.divf %468, %469 : vector<2x32xf32>
    %471 = arith.mulf %462, %443 : vector<2x32xf32>
    %472 = arith.mulf %456, %464 : vector<2x32xf32>
    %473 = arith.addf %471, %472 : vector<2x32xf32>
    %474 = math.tanh %473 : vector<2x32xf32>
    %475 = arith.mulf %470, %474 : vector<2x32xf32>
    %c6_i32_134 = arith.constant 6 : i32
    %476 = arith.index_cast %c6_i32_134 : i32 to index
    %c0_135 = arith.constant 0 : index
    %c0_136 = arith.constant 0 : index
    %477 = vector.load %arg10[%476, %c0_135, %c0_136] : memref<8x2x128xf32, #tpu.memory_space<vmem>>, vector<1x2x128xf32>
    %478 = vector.shape_cast %477 : vector<1x2x128xf32> to vector<2x128xf32>
    %cst_137 = arith.constant dense<0.000000e+00> : vector<2x128xf32>
    %479 = tpu.matmul %475, %293, %cst_137 {dimension_numbers = #tpu.dot_dimension_numbers<[1], [0], [0], [1], [0, 0, 1, 1], [], []>} : vector<2x32xf32>, vector<32x128xf32>, vector<2x128xf32> -> vector<2x128xf32>
    %480 = arith.addf %478, %479 : vector<2x128xf32>
    %481 = vector.extract_strided_slice %480 {offsets = [0, 0], sizes = [2, 32], strides = [1, 1]} : vector<2x128xf32> to vector<2x32xf32>
    %482 = arith.negf %481 : vector<2x32xf32>
    %483 = math.exp %482 : vector<2x32xf32>
    %cst_138 = arith.constant 1.000000e+00 : f32
    %484 = vector.broadcast %cst_138 : f32 to vector<2x32xf32>
    %485 = arith.addf %484, %483 : vector<2x32xf32>
    %486 = arith.divf %484, %485 : vector<2x32xf32>
    %487 = vector.extract_strided_slice %480 {offsets = [0, 32], sizes = [2, 32], strides = [1, 1]} : vector<2x128xf32> to vector<2x32xf32>
    %488 = arith.negf %487 : vector<2x32xf32>
    %489 = math.exp %488 : vector<2x32xf32>
    %cst_139 = arith.constant 1.000000e+00 : f32
    %490 = vector.broadcast %cst_139 : f32 to vector<2x32xf32>
    %491 = arith.addf %490, %489 : vector<2x32xf32>
    %492 = arith.divf %490, %491 : vector<2x32xf32>
    %493 = vector.extract_strided_slice %480 {offsets = [0, 64], sizes = [2, 32], strides = [1, 1]} : vector<2x128xf32> to vector<2x32xf32>
    %494 = math.tanh %493 : vector<2x32xf32>
    %495 = vector.extract_strided_slice %480 {offsets = [0, 96], sizes = [2, 32], strides = [1, 1]} : vector<2x128xf32> to vector<2x32xf32>
    %496 = arith.negf %495 : vector<2x32xf32>
    %497 = math.exp %496 : vector<2x32xf32>
    %cst_140 = arith.constant 1.000000e+00 : f32
    %498 = vector.broadcast %cst_140 : f32 to vector<2x32xf32>
    %499 = arith.addf %498, %497 : vector<2x32xf32>
    %500 = arith.divf %498, %499 : vector<2x32xf32>
    %501 = arith.mulf %492, %473 : vector<2x32xf32>
    %502 = arith.mulf %486, %494 : vector<2x32xf32>
    %503 = arith.addf %501, %502 : vector<2x32xf32>
    %504 = math.tanh %503 : vector<2x32xf32>
    %505 = arith.mulf %500, %504 : vector<2x32xf32>
    %c7_i32_141 = arith.constant 7 : i32
    %506 = arith.index_cast %c7_i32_141 : i32 to index
    %c0_142 = arith.constant 0 : index
    %c0_143 = arith.constant 0 : index
    %507 = vector.load %arg10[%506, %c0_142, %c0_143] : memref<8x2x128xf32, #tpu.memory_space<vmem>>, vector<1x2x128xf32>
    %508 = vector.shape_cast %507 : vector<1x2x128xf32> to vector<2x128xf32>
    %cst_144 = arith.constant dense<0.000000e+00> : vector<2x128xf32>
    %509 = tpu.matmul %505, %293, %cst_144 {dimension_numbers = #tpu.dot_dimension_numbers<[1], [0], [0], [1], [0, 0, 1, 1], [], []>} : vector<2x32xf32>, vector<32x128xf32>, vector<2x128xf32> -> vector<2x128xf32>
    %510 = arith.addf %508, %509 : vector<2x128xf32>
    %511 = vector.extract_strided_slice %510 {offsets = [0, 0], sizes = [2, 32], strides = [1, 1]} : vector<2x128xf32> to vector<2x32xf32>
    %512 = arith.negf %511 : vector<2x32xf32>
    %513 = math.exp %512 : vector<2x32xf32>
    %cst_145 = arith.constant 1.000000e+00 : f32
    %514 = vector.broadcast %cst_145 : f32 to vector<2x32xf32>
    %515 = arith.addf %514, %513 : vector<2x32xf32>
    %516 = arith.divf %514, %515 : vector<2x32xf32>
    %517 = vector.extract_strided_slice %510 {offsets = [0, 32], sizes = [2, 32], strides = [1, 1]} : vector<2x128xf32> to vector<2x32xf32>
    %518 = arith.negf %517 : vector<2x32xf32>
    %519 = math.exp %518 : vector<2x32xf32>
    %cst_146 = arith.constant 1.000000e+00 : f32
    %520 = vector.broadcast %cst_146 : f32 to vector<2x32xf32>
    %521 = arith.addf %520, %519 : vector<2x32xf32>
    %522 = arith.divf %520, %521 : vector<2x32xf32>
    %523 = vector.extract_strided_slice %510 {offsets = [0, 64], sizes = [2, 32], strides = [1, 1]} : vector<2x128xf32> to vector<2x32xf32>
    %524 = math.tanh %523 : vector<2x32xf32>
    %525 = vector.extract_strided_slice %510 {offsets = [0, 96], sizes = [2, 32], strides = [1, 1]} : vector<2x128xf32> to vector<2x32xf32>
    %526 = arith.negf %525 : vector<2x32xf32>
    %527 = math.exp %526 : vector<2x32xf32>
    %cst_147 = arith.constant 1.000000e+00 : f32
    %528 = vector.broadcast %cst_147 : f32 to vector<2x32xf32>
    %529 = arith.addf %528, %527 : vector<2x32xf32>
    %530 = arith.divf %528, %529 : vector<2x32xf32>
    %531 = arith.mulf %522, %503 : vector<2x32xf32>
    %532 = arith.mulf %516, %524 : vector<2x32xf32>
    %533 = arith.addf %531, %532 : vector<2x32xf32>
    %534 = math.tanh %533 : vector<2x32xf32>
    %535 = arith.mulf %530, %534 : vector<2x32xf32>
    %c8_i32_148 = arith.constant 8 : i32
    %c0_149 = arith.constant 0 : index
    %c0_150 = arith.constant 0 : index
    %536 = vector.load %arg7[%c0_149, %c0_150] : memref<32x8xf32, #tpu.memory_space<vmem>>, vector<32x8xf32>
    %cst_151 = arith.constant dense<0.000000e+00> : vector<2x8xf32>
    %537 = tpu.matmul %535, %536, %cst_151 {dimension_numbers = #tpu.dot_dimension_numbers<[1], [0], [0], [1], [0, 0, 1, 1], [], []>} : vector<2x32xf32>, vector<32x8xf32>, vector<2x8xf32> -> vector<2x8xf32>
    %c0_152 = arith.constant 0 : index
    %c0_153 = arith.constant 0 : index
    %538 = vector.load %arg8[%c0_152, %c0_153] : memref<1x8xf32, #tpu.memory_space<vmem>>, vector<1x8xf32>
    %539 = vector.broadcast %538 : vector<1x8xf32> to vector<2x8xf32>
    %540 = arith.addf %537, %539 : vector<2x8xf32>
    %c0_154 = arith.constant 0 : index
    %c0_155 = arith.constant 0 : index
    %541 = vector.load %arg9[%c0_154, %c0_155] : memref<2x8xf32, #tpu.memory_space<vmem>>, vector<2x8xf32>
    tpu.vector_store %arg9[%c0_154, %c0_155], %540 {strides = array<i32>} : memref<2x8xf32, #tpu.memory_space<vmem>>, vector<2x8xf32>,
    return
  }
}

</mosaic_0001>

<llo_original>
// kernel: lstm_net_forward.1
$region0: #{lstm_net_forward.1}
  #allocation0 [shape = 'u32[]', space=smem, size = 0x4, offset = 0x4, fixed_abs, tag = 'smem constant byte address 0x4 - core index']
  #allocation1 [shape = 'u32[144,128]{1,0:T(1,128)}', space=vmem, size = 0x12000, scoped, tag = 'internal scratch']
  #allocation2 [shape = 'f32[8,2,128]{2,1,0:T(2,128)}', space=vmem, size = 0x2000, scoped, tag = 'scratch operand']
  #allocation3 [shape = 'f32[8,2,32]{2,1,0:T(2,128)}', space=vmem, size = 0x2000, scoped, tag = 'scratch operand']
  %s0 = inlined_call_operand.vmem [shape: f32[8,2,16], index: 0, kind: input, shape index: {}]
  %s1 = inlined_call_operand.hbm [shape: f32[16,128], index: 1, kind: input, shape index: {}]
  %s2 = inlined_call_operand.vmem [shape: f32[32,128], index: 2, kind: input, shape index: {}]
  %s3 = inlined_call_operand.vmem [shape: f32[1,128], index: 3, kind: input, shape index: {}]
  %s4 = inlined_call_operand.vmem [shape: f32[32,128], index: 4, kind: input, shape index: {}]
  %s5 = inlined_call_operand.vmem [shape: f32[32,128], index: 5, kind: input, shape index: {}]
  %s6 = inlined_call_operand.vmem [shape: f32[1,128], index: 6, kind: input, shape index: {}]
  %s7 = inlined_call_operand.vmem [shape: f32[32,8], index: 7, kind: input, shape index: {}]
  %s8 = inlined_call_operand.hbm [shape: f32[1,8], index: 8, kind: input, shape index: {}]
  %s9 = inlined_call_operand.hbm [shape: f32[2,8], index: 9, kind: output, shape index: {}]
  %s10 = sld [smem:[#allocation0]]
  $region54: #{lstm_net_forward.1} parent=0
    _
  %s12 = ssub.s32 1, %s10
  %s13 = scalar_select 0, %s12, %s10
  $region1: #{lstm_net_forward.1} parent=0
    #allocation4 [shape = 'u8[8192]{0}', space=vmem, size = 0x2000, scoped, tag = 'input window, operand 1, single buffered']
    #allocation5 [shape = 's32[1]{0}', space=sflag, size = 0x4, scoped, tag = 'scoped memory for lstm_net_forward.1']
    #allocation6 [shape = 's32[1]{0}', space=sflag, size = 0x4, scoped, tag = 'scoped memory for lstm_net_forward.1']
    #allocation7 [shape = 'u8[512]{0}', space=vmem, size = 0x400, scoped, tag = 'input window, operand 8, single buffered']
    #allocation8 [shape = 's32[1]{0}', space=sflag, size = 0x4, scoped, tag = 'scoped memory for lstm_net_forward.1']
    #allocation9 [shape = 'u8[1024]{0}', space=vmem, size = 0x400, scoped, tag = 'output window, operand 0, single buffered']
    %14 = vsyncpa [#allocation5], 0
    %15 = vsyncpa [#allocation8], 0
    %16 = vsyncpa [#allocation6], 0
    // Predicated region
    $region2: #{lstm_net_forward.1} parent=1 // pred_check
      _
    $region3: #{lstm_net_forward.1} parent=1 // pred_check_branch
      %18 = sbr.rel (0) target = $region5
    $region4: #{lstm_net_forward.1} parent=1 // pred_region
      _
    $region5: #{lstm_net_forward.1} parent=1 // pred_fallthru
      _
    // Predicated region
    $region6: #{lstm_net_forward.1} parent=1 // pred_check
      _
    $region7: #{lstm_net_forward.1} parent=1 // pred_check_branch
      %20 = sbr.rel (0) target = $region9
    $region8: #{lstm_net_forward.1} parent=1 // pred_region
      %s22 = ssub.s32 256, 256
      %23 = vsyncadd [#allocation5], %s22
      %s24 = sshll.u32 [#allocation4], 4
      %s25 = int_to_ptr.vmem [resolvable:$true] %s24
      %30 = dma.hbm_to_vmem [thread:$0]  %s1, 256, %s25, [#allocation5], 128, 128, 8
    $region9: #{lstm_net_forward.1} parent=1 // pred_fallthru
      _
    // Predicated region
    $region10: #{lstm_net_forward.1} parent=1 // pred_check
      _
    $region11: #{lstm_net_forward.1} parent=1 // pred_check_branch
      %32 = sbr.rel (0) target = $region13
    $region12: #{lstm_net_forward.1} parent=1 // pred_region
      _
    $region13: #{lstm_net_forward.1} parent=1 // pred_fallthru
      _
    // Predicated region
    $region14: #{lstm_net_forward.1} parent=1 // pred_check
      _
    $region15: #{lstm_net_forward.1} parent=1 // pred_check_branch
      %34 = sbr.rel (0) target = $region17
    $region16: #{lstm_net_forward.1} parent=1 // pred_region
      _
    $region17: #{lstm_net_forward.1} parent=1 // pred_fallthru
      _
    // Predicated region
    $region18: #{lstm_net_forward.1} parent=1 // pred_check
      _
    $region19: #{lstm_net_forward.1} parent=1 // pred_check_branch
      %36 = sbr.rel (0) target = $region21
    $region20: #{lstm_net_forward.1} parent=1 // pred_region
      _
    $region21: #{lstm_net_forward.1} parent=1 // pred_fallthru
      _
    // Predicated region
    $region22: #{lstm_net_forward.1} parent=1 // pred_check
      _
    $region23: #{lstm_net_forward.1} parent=1 // pred_check_branch
      %38 = sbr.rel (0) target = $region25
    $region24: #{lstm_net_forward.1} parent=1 // pred_region
      _
    $region25: #{lstm_net_forward.1} parent=1 // pred_fallthru
      _
    // Predicated region
    $region26: #{lstm_net_forward.1} parent=1 // pred_check
      _
    $region27: #{lstm_net_forward.1} parent=1 // pred_check_branch
      %40 = sbr.rel (0) target = $region29
    $region28: #{lstm_net_forward.1} parent=1 // pred_region
      _
    $region29: #{lstm_net_forward.1} parent=1 // pred_fallthru
      _
    // Predicated region
    $region30: #{lstm_net_forward.1} parent=1 // pred_check
      _
    $region31: #{lstm_net_forward.1} parent=1 // pred_check_branch
      %42 = sbr.rel (0) target = $region33
    $region32: #{lstm_net_forward.1} parent=1 // pred_region
      _
    $region33: #{lstm_net_forward.1} parent=1 // pred_fallthru
      _
    // Predicated region
    $region34: #{lstm_net_forward.1} parent=1 // pred_check
      _
    $region35: #{lstm_net_forward.1} parent=1 // pred_check_branch
      %44 = sbr.rel (0) target = $region37
    $region36: #{lstm_net_forward.1} parent=1 // pred_region
      %s46 = ssub.s32 16, 16
      %47 = vsyncadd [#allocation8], %s46
      %s49 = sshll.u32 [#allocation7], 4
      %s50 = int_to_ptr.vmem [resolvable:$true] %s49
      %52 = dma.hbm_to_vmem [thread:$0]  %s8, 16, %s50, [#allocation8]
    $region37: #{lstm_net_forward.1} parent=1 // pred_fallthru
      _
    // Predicated region
    $region38: #{lstm_net_forward.1} parent=1 // pred_check
      _
    $region39: #{lstm_net_forward.1} parent=1 // pred_check_branch
      %54 = sbr.rel (0) target = $region41
    $region40: #{lstm_net_forward.1} parent=1 // pred_region
      %55 = dma.done [#allocation5], 256
    $region41: #{lstm_net_forward.1} parent=1 // pred_fallthru
      _
    // Predicated region
    $region42: #{lstm_net_forward.1} parent=1 // pred_check
      _
    $region43: #{lstm_net_forward.1} parent=1 // pred_check_branch
      %57 = sbr.rel (0) target = $region45
    $region44: #{lstm_net_forward.1} parent=1 // pred_region
      %58 = dma.done [#allocation8], 16
    $region45: #{lstm_net_forward.1} parent=1 // pred_fallthru
      _
    %v59 = vld [vmem:[%s0] sm:$0x3]
    %v60 = vld [vmem:[%s0 + $0x2] sm:$0x3]
    %v61 = vld [vmem:[%s0 + $0x4] sm:$0x3]
    %v62 = vld [vmem:[%s0 + $0x6] sm:$0x3]
    %v63 = vld [vmem:[%s0 + $0x8] sm:$0x3]
    %v64 = vld [vmem:[%s0 + $0xa] sm:$0x3]
    %v65 = vld [vmem:[%s0 + $0xc] sm:$0x3]
    %v66 = vld [vmem:[%s0 + $0xe] sm:$0x3]
    %v67 = vld [vmem:[#allocation4] sm:$0xff]
    %v68 = vld [vmem:[#allocation4 + $0x8] sm:$0xff]
    %v69 = vld [vmem:[%s3] sm:$0x1]
    %v71 = vlaneseq
    %v72 = vshrl.u32 %v71, 7
    %v73 = vsub.s32 0, %v72
    %v74 = vrot.slane %v69, %v73
    %v84 = vcombine.low %v59, %v60
    %v85 = vcombine.low %v61, %v62
    %v87 = vunpack.c.l.s4 1983009808
    %v88 = vunpack.c.0.s8 %v87
    %v89 = vlaneseq
    %v90 = vshrl.u32 %v89, 7
    %v91 = vsub.s32 %v88, %v90
    %v92 = vrot.slane %v84, %v91
    %v94 = vunpack.c.l.s4 1983009808
    %v95 = vunpack.c.0.s8 %v94
    %v96 = vlaneseq
    %v97 = vshrl.u32 %v96, 7
    %v98 = vsub.s32 %v95, %v97
    %v99 = vrot.slane %v85, %v98
    %v100 = vcombine.low %v92, %v99
    %v101 = vcombine.low %v63, %v64
    %v102 = vcombine.low %v65, %v66
    %v104 = vunpack.c.l.s4 1983009808
    %v105 = vunpack.c.0.s8 %v104
    %v106 = vlaneseq
    %v107 = vshrl.u32 %v106, 7
    %v108 = vsub.s32 %v105, %v107
    %v109 = vrot.slane %v101, %v108
    %v111 = vunpack.c.l.s4 1983009808
    %v112 = vunpack.c.0.s8 %v111
    %v113 = vlaneseq
    %v114 = vshrl.u32 %v113, 7
    %v115 = vsub.s32 %v112, %v114
    %v116 = vrot.slane %v102, %v115
    %v117 = vcombine.low %v109, %v116
    %vm118 = vcmask 130048
    %v119 = vsel %vm118, %v100, 0
    %v121 = vsel %vm118, %v117, 0
    %123 = vmatprep.subr.mxu0 0.0
    %124 = vmatpush1.msra.mxu0 %v67
    %125 = vmatprep.subr.mxu0 0.0
    %126 = vmatpush1.msra.mxu0 %v68
    %127 = vmatprep.subr.mxu0 0.0
    %128 = vmatpush1.msra.mxu0 0.0
    %129 = vmatprep.subr.mxu0 0.0
    %130 = vmatpush1.msra.mxu0 0.0
    %131 = vmatprep.subr.mxu0 0.0
    %132 = vmatpush1.msra.mxu0 0.0
    %133 = vmatprep.subr.mxu0 0.0
    %134 = vmatpush1.msra.mxu0 0.0
    %135 = vmatprep.subr.mxu0 0.0
    %136 = vmatpush1.msra.mxu0 0.0
    %137 = vmatprep.subr.mxu0 0.0
    %138 = vmatpush1.msra.mxu0 0.0
    %139 = vmatprep.subr.mxu0 0.0
    %140 = vmatpush1.msra.mxu0 0.0
    %141 = vmatprep.subr.mxu0 0.0
    %142 = vmatpush1.msra.mxu0 0.0
    %143 = vmatprep.subr.mxu0 0.0
    %144 = vmatpush1.msra.mxu0 0.0
    %145 = vmatprep.subr.mxu0 0.0
    %146 = vmatpush1.msra.mxu0 0.0
    %147 = vmatprep.subr.mxu0 0.0
    %148 = vmatpush1.msra.mxu0 0.0
    %149 = vmatprep.subr.mxu0 0.0
    %150 = vmatpush1.msra.mxu0 0.0
    %151 = vmatprep.subr.mxu0 0.0
    %152 = vmatpush1.msra.mxu0 0.0
    %153 = vmatprep.subr.mxu0 0.0
    %154 = vmatpush1.msra.mxu0 0.0
    %155 = vmatprep.subr.mxu0 0.0
    %156 = vmatpush1.msra.mxu0 0.0
    %157 = vmatprep.subr.mxu0 0.0
    %158 = vmatpush1.msra.mxu0 0.0
    %159 = vmatprep.subr.mxu0 0.0
    %160 = vmatpush1.msra.mxu0 0.0
    %161 = vmatprep.subr.mxu0 0.0
    %162 = vmatpush1.msra.mxu0 0.0
    %163 = vmatprep.subr.mxu0 0.0
    %164 = vmatpush1.msra.mxu0 0.0
    %165 = vmatprep.subr.mxu0 0.0
    %166 = vmatpush1.msra.mxu0 0.0
    %167 = vmatprep.subr.mxu0 0.0
    %168 = vmatpush1.msra.mxu0 0.0
    %169 = vmatprep.subr.mxu0 0.0
    %170 = vmatpush1.msra.mxu0 0.0
    %171 = vmatprep.subr.mxu0 0.0
    %172 = vmatpush1.msra.mxu0 0.0
    %173 = vmatprep.subr.mxu0 0.0
    %174 = vmatpush1.msra.mxu0 0.0
    %175 = vmatprep.subr.mxu0 0.0
    %176 = vmatpush1.msra.mxu0 0.0
    %177 = vmatprep.subr.mxu0 0.0
    %178 = vmatpush1.msra.mxu0 0.0
    %179 = vmatprep.subr.mxu0 0.0
    %180 = vmatpush1.msra.mxu0 0.0
    %181 = vmatprep.subr.mxu0 0.0
    %182 = vmatpush1.msra.mxu0 0.0
    %183 = vmatprep.subr.mxu0 0.0
    %184 = vmatpush1.msra.mxu0 0.0
    %185 = vmatprep.subr.mxu0 0.0
    %186 = vmatpush1.msra.mxu0 0.0
    %187 = vmatprep.mubr.f32.mxu0 0.0
    %188 = vmatmul.mubr.f32.gmra.mrb[0].mxu0 %v119
    %v189 = vpop.f32.mrb[0].mxu0
    %v190 = vadd.f32 %v74, %v189
    %v191 = vpop.f32.mrb[0].mxu0
    %192 = vmatprep.mubr.f32.mxu0 0.0
    %193 = vmatmul.mubr.f32.gmra.mrb[0].mxu0 %v121
    %v194 = vpop.f32.mrb[0].mxu0
    %v195 = vadd.f32 %v74, %v194
    %v196 = vpop.f32.mrb[0].mxu0
    %197 = vdwg.mxu0
    %v200 = vcombine.high %v190, %v190
    %v202 = vunpack.c.l.s4 1983009808
    %v203 = vunpack.c.0.s8 %v202
    %v204 = vlaneseq
    %v205 = vshrl.u32 %v204, 7
    %v206 = vsub.s32 %v203, %v205
    %v207 = vrot.slane %v190, %v206
    %v209 = vunpack.c.l.s4 1983009808
    %v210 = vunpack.c.0.s8 %v209
    %v211 = vlaneseq
    %v212 = vshrl.u32 %v211, 7
    %v213 = vsub.s32 %v210, %v212
    %v214 = vrot.slane %v200, %v213
    %v215 = vcombine.high %v207, %v207
    %v216 = vcombine.high %v214, %v214
    %v217 = vcombine.high %v195, %v195
    %v219 = vunpack.c.l.s4 1983009808
    %v220 = vunpack.c.0.s8 %v219
    %v221 = vlaneseq
    %v222 = vshrl.u32 %v221, 7
    %v223 = vsub.s32 %v220, %v222
    %v224 = vrot.slane %v195, %v223
    %v226 = vunpack.c.l.s4 1983009808
    %v227 = vunpack.c.0.s8 %v226
    %v228 = vlaneseq
    %v229 = vshrl.u32 %v228, 7
    %v230 = vsub.s32 %v227, %v229
    %v231 = vrot.slane %v217, %v230
    %v232 = vcombine.high %v224, %v224
    %v233 = vcombine.high %v231, %v231
    %242 = vst [vmem:[#allocation2] sm:$0x3] %v207
    %243 = vst [vmem:[#allocation2 + $0x2] sm:$0x3] %v215
    %244 = vst [vmem:[#allocation2 + $0x4] sm:$0x3] %v214
    %245 = vst [vmem:[#allocation2 + $0x6] sm:$0x3] %v216
    %246 = vst [vmem:[#allocation2 + $0x8] sm:$0x3] %v224
    %247 = vst [vmem:[#allocation2 + $0xa] sm:$0x3] %v232
    %248 = vst [vmem:[#allocation2 + $0xc] sm:$0x3] %v231
    %249 = vst [vmem:[#allocation2 + $0xe] sm:$0x3] %v233
    %v250 = vld [vmem:[%s2] sm:$0xff]
    %v251 = vld [vmem:[%s2 + $0x8] sm:$0xff]
    %v252 = vld [vmem:[%s2 + $0x10] sm:$0xff]
    %v253 = vld [vmem:[%s2 + $0x18] sm:$0xff]
    %v254 = vld [vmem:[#allocation2] sm:$0x3]
    %vm255 = vcmask 261120
    %v257 = vsel %vm255, 0.0, 0
    %259 = vmatprep.subr.mxu0 0.0
    %260 = vmatpush1.msra.mxu0 %v250
    %261 = vmatprep.subr.mxu0 0.0
    %262 = vmatpush1.msra.mxu0 %v251
    %263 = vmatprep.subr.mxu0 0.0
    %264 = vmatpush1.msra.mxu0 %v252
    %265 = vmatprep.subr.mxu0 0.0
    %266 = vmatpush1.msra.mxu0 %v253
    %267 = vmatprep.subr.mxu0 0.0
    %268 = vmatpush1.msra.mxu0 0.0
    %269 = vmatprep.subr.mxu0 0.0
    %270 = vmatpush1.msra.mxu0 0.0
    %271 = vmatprep.subr.mxu0 0.0
    %272 = vmatpush1.msra.mxu0 0.0
    %273 = vmatprep.subr.mxu0 0.0
    %274 = vmatpush1.msra.mxu0 0.0
    %275 = vmatprep.subr.mxu0 0.0
    %276 = vmatpush1.msra.mxu0 0.0
    %277 = vmatprep.subr.mxu0 0.0
    %278 = vmatpush1.msra.mxu0 0.0
    %279 = vmatprep.subr.mxu0 0.0
    %280 = vmatpush1.msra.mxu0 0.0
    %281 = vmatprep.subr.mxu0 0.0
    %282 = vmatpush1.msra.mxu0 0.0
    %283 = vmatprep.subr.mxu0 0.0
    %284 = vmatpush1.msra.mxu0 0.0
    %285 = vmatprep.subr.mxu0 0.0
    %286 = vmatpush1.msra.mxu0 0.0
    %287 = vmatprep.subr.mxu0 0.0
    %288 = vmatpush1.msra.mxu0 0.0
    %289 = vmatprep.subr.mxu0 0.0
    %290 = vmatpush1.msra.mxu0 0.0
    %291 = vmatprep.subr.mxu0 0.0
    %292 = vmatpush1.msra.mxu0 0.0
    %293 = vmatprep.subr.mxu0 0.0
    %294 = vmatpush1.msra.mxu0 0.0
    %295 = vmatprep.subr.mxu0 0.0
    %296 = vmatpush1.msra.mxu0 0.0
    %297 = vmatprep.subr.mxu0 0.0
    %298 = vmatpush1.msra.mxu0 0.0
    %299 = vmatprep.subr.mxu0 0.0
    %300 = vmatpush1.msra.mxu0 0.0
    %301 = vmatprep.subr.mxu0 0.0
    %302 = vmatpush1.msra.mxu0 0.0
    %303 = vmatprep.subr.mxu0 0.0
    %304 = vmatpush1.msra.mxu0 0.0
    %305 = vmatprep.subr.mxu0 0.0
    %306 = vmatpush1.msra.mxu0 0.0
    %307 = vmatprep.subr.mxu0 0.0
    %308 = vmatpush1.msra.mxu0 0.0
    %309 = vmatprep.subr.mxu0 0.0
    %310 = vmatpush1.msra.mxu0 0.0
    %311 = vmatprep.subr.mxu0 0.0
    %312 = vmatpush1.msra.mxu0 0.0
    %313 = vmatprep.subr.mxu0 0.0
    %314 = vmatpush1.msra.mxu0 0.0
    %315 = vmatprep.subr.mxu0 0.0
    %316 = vmatpush1.msra.mxu0 0.0
    %317 = vmatprep.subr.mxu0 0.0
    %318 = vmatpush1.msra.mxu0 0.0
    %319 = vmatprep.subr.mxu0 0.0
    %320 = vmatpush1.msra.mxu0 0.0
    %321 = vmatprep.subr.mxu0 0.0
    %322 = vmatpush1.msra.mxu0 0.0
    %323 = vmatprep.mubr.f32.mxu0 0.0
    %324 = vmatmul.mubr.f32.gmra.mrb[0].mxu0 %v257
    %v325 = vpop.f32.mrb[0].mxu0
    %v326 = vadd.f32 0.0, %v325
    %v327 = vpop.f32.mrb[0].mxu0
    %328 = vdwg.mxu0
    %v329 = vadd.f32 %v254, %v326
    %v330 = vxor.u32 %v329, 2147483648
    %v331 = vmul.f32 %v330, 1.442695
    %v332 = vpow.pop %v331
    %v333 = vadd.f32 %v332, 1.0
    %v334 = vrcp.pop %v333
    %v335 = vmul.f32 1.0, %v334
    %v336 = vtanh.pop %v329
    %v337 = vmul.f32 %v335, 0.0
    %339 = vrot.lane.b32.xlu0 %v336, 64
    %v340 = vpop.permute.xlu0 %339
    %v342 = vmul.f32 %v335, %v340
    %344 = vrot.lane.b32.xlu0 %v342, 32
    %v345 = vpop.permute.xlu0 %344
    %v347 = vadd.f32 %v337, %v345
    %v348 = vtanh.pop %v347
    %350 = vrot.lane.b32.xlu0 %v348, 64
    %v351 = vpop.permute.xlu0 %350
    %v353 = vmul.f32 %v335, %v351
    %355 = vrot.lane.b32.xlu0 %v353, 32
    %v356 = vpop.permute.xlu0 %355
    %vm358 = vcmask 254976
    %359 = vst.msk [vmem:[#allocation3] sm:$0x3] %vm358, %v356
    %s360 = scalar_lea.vmem [#allocation2], 2
    %v361 = vld [vmem:[%s360] sm:$0x3]
    %v362 = vsel %vm255, %v356, 0
    %364 = vmatprep.subr.mxu0 0.0
    %365 = vmatpush1.msra.mxu0 %v250
    %366 = vmatprep.subr.mxu0 0.0
    %367 = vmatpush1.msra.mxu0 %v251
    %368 = vmatprep.subr.mxu0 0.0
    %369 = vmatpush1.msra.mxu0 %v252
    %370 = vmatprep.subr.mxu0 0.0
    %371 = vmatpush1.msra.mxu0 %v253
    %372 = vmatprep.subr.mxu0 0.0
    %373 = vmatpush1.msra.mxu0 0.0
    %374 = vmatprep.subr.mxu0 0.0
    %375 = vmatpush1.msra.mxu0 0.0
    %376 = vmatprep.subr.mxu0 0.0
    %377 = vmatpush1.msra.mxu0 0.0
    %378 = vmatprep.subr.mxu0 0.0
    %379 = vmatpush1.msra.mxu0 0.0
    %380 = vmatprep.subr.mxu0 0.0
    %381 = vmatpush1.msra.mxu0 0.0
    %382 = vmatprep.subr.mxu0 0.0
    %383 = vmatpush1.msra.mxu0 0.0
    %384 = vmatprep.subr.mxu0 0.0
    %385 = vmatpush1.msra.mxu0 0.0
    %386 = vmatprep.subr.mxu0 0.0
    %387 = vmatpush1.msra.mxu0 0.0
    %388 = vmatprep.subr.mxu0 0.0
    %389 = vmatpush1.msra.mxu0 0.0
    %390 = vmatprep.subr.mxu0 0.0
    %391 = vmatpush1.msra.mxu0 0.0
    %392 = vmatprep.subr.mxu0 0.0
    %393 = vmatpush1.msra.mxu0 0.0
    %394 = vmatprep.subr.mxu0 0.0
    %395 = vmatpush1.msra.mxu0 0.0
    %396 = vmatprep.subr.mxu0 0.0
    %397 = vmatpush1.msra.mxu0 0.0
    %398 = vmatprep.subr.mxu0 0.0
    %399 = vmatpush1.msra.mxu0 0.0
    %400 = vmatprep.subr.mxu0 0.0
    %401 = vmatpush1.msra.mxu0 0.0
    %402 = vmatprep.subr.mxu0 0.0
    %403 = vmatpush1.msra.mxu0 0.0
    %404 = vmatprep.subr.mxu0 0.0
    %405 = vmatpush1.msra.mxu0 0.0
    %406 = vmatprep.subr.mxu0 0.0
    %407 = vmatpush1.msra.mxu0 0.0
    %408 = vmatprep.subr.mxu0 0.0
    %409 = vmatpush1.msra.mxu0 0.0
    %410 = vmatprep.subr.mxu0 0.0
    %411 = vmatpush1.msra.mxu0 0.0
    %412 = vmatprep.subr.mxu0 0.0
    %413 = vmatpush1.msra.mxu0 0.0
    %414 = vmatprep.subr.mxu0 0.0
    %415 = vmatpush1.msra.mxu0 0.0
    %416 = vmatprep.subr.mxu0 0.0
    %417 = vmatpush1.msra.mxu0 0.0
    %418 = vmatprep.subr.mxu0 0.0
    %419 = vmatpush1.msra.mxu0 0.0
    %420 = vmatprep.subr.mxu0 0.0
    %421 = vmatpush1.msra.mxu0 0.0
    %422 = vmatprep.subr.mxu0 0.0
    %423 = vmatpush1.msra.mxu0 0.0
    %424 = vmatprep.subr.mxu0 0.0
    %425 = vmatpush1.msra.mxu0 0.0
    %426 = vmatprep.subr.mxu0 0.0
    %427 = vmatpush1.msra.mxu0 0.0
    %428 = vmatprep.mubr.f32.mxu0 0.0
    %429 = vmatmul.mubr.f32.gmra.mrb[0].mxu0 %v362
    %v430 = vpop.f32.mrb[0].mxu0
    %v431 = vadd.f32 0.0, %v430
    %v432 = vpop.f32.mrb[0].mxu0
    %433 = vdwg.mxu0
    %v434 = vadd.f32 %v361, %v431
    %v435 = vxor.u32 %v434, 2147483648
    %v436 = vmul.f32 %v435, 1.442695
    %v437 = vpow.pop %v436
    %v438 = vadd.f32 %v437, 1.0
    %v439 = vrcp.pop %v438
    %v440 = vmul.f32 1.0, %v439
    %v441 = vtanh.pop %v434
    %v442 = vmul.f32 %v440, %v347
    %444 = vrot.lane.b32.xlu0 %v441, 64
    %v445 = vpop.permute.xlu0 %444
    %v447 = vmul.f32 %v440, %v445
    %449 = vrot.lane.b32.xlu0 %v447, 32
    %v450 = vpop.permute.xlu0 %449
    %v452 = vadd.f32 %v442, %v450
    %v453 = vtanh.pop %v452
    %455 = vrot.lane.b32.xlu0 %v453, 64
    %v456 = vpop.permute.xlu0 %455
    %v458 = vmul.f32 %v440, %v456
    %460 = vrot.lane.b32.xlu0 %v458, 32
    %v461 = vpop.permute.xlu0 %460
    %s463 = scalar_lea.vmem [#allocation3], 2
    %464 = vst.msk [vmem:[%s463] sm:$0x3] %vm358, %v461
    %s465 = scalar_lea.vmem [#allocation2], 4
    %v466 = vld [vmem:[%s465] sm:$0x3]
    %v467 = vsel %vm255, %v461, 0
    %469 = vmatprep.subr.mxu0 0.0
    %470 = vmatpush1.msra.mxu0 %v250
    %471 = vmatprep.subr.mxu0 0.0
    %472 = vmatpush1.msra.mxu0 %v251
    %473 = vmatprep.subr.mxu0 0.0
    %474 = vmatpush1.msra.mxu0 %v252
    %475 = vmatprep.subr.mxu0 0.0
    %476 = vmatpush1.msra.mxu0 %v253
    %477 = vmatprep.subr.mxu0 0.0
    %478 = vmatpush1.msra.mxu0 0.0
    %479 = vmatprep.subr.mxu0 0.0
    %480 = vmatpush1.msra.mxu0 0.0
    %481 = vmatprep.subr.mxu0 0.0
    %482 = vmatpush1.msra.mxu0 0.0
    %483 = vmatprep.subr.mxu0 0.0
    %484 = vmatpush1.msra.mxu0 0.0
    %485 = vmatprep.subr.mxu0 0.0
    %486 = vmatpush1.msra.mxu0 0.0
    %487 = vmatprep.subr.mxu0 0.0
    %488 = vmatpush1.msra.mxu0 0.0
    %489 = vmatprep.subr.mxu0 0.0
    %490 = vmatpush1.msra.mxu0 0.0
    %491 = vmatprep.subr.mxu0 0.0
    %492 = vmatpush1.msra.mxu0 0.0
    %493 = vmatprep.subr.mxu0 0.0
    %494 = vmatpush1.msra.mxu0 0.0
    %495 = vmatprep.subr.mxu0 0.0
    %496 = vmatpush1.msra.mxu0 0.0
    %497 = vmatprep.subr.mxu0 0.0
    %498 = vmatpush1.msra.mxu0 0.0
    %499 = vmatprep.subr.mxu0 0.0
    %500 = vmatpush1.msra.mxu0 0.0
    %501 = vmatprep.subr.mxu0 0.0
    %502 = vmatpush1.msra.mxu0 0.0
    %503 = vmatprep.subr.mxu0 0.0
    %504 = vmatpush1.msra.mxu0 0.0
    %505 = vmatprep.subr.mxu0 0.0
    %506 = vmatpush1.msra.mxu0 0.0
    %507 = vmatprep.subr.mxu0 0.0
    %508 = vmatpush1.msra.mxu0 0.0
    %509 = vmatprep.subr.mxu0 0.0
    %510 = vmatpush1.msra.mxu0 0.0
    %511 = vmatprep.subr.mxu0 0.0
    %512 = vmatpush1.msra.mxu0 0.0
    %513 = vmatprep.subr.mxu0 0.0
    %514 = vmatpush1.msra.mxu0 0.0
    %515 = vmatprep.subr.mxu0 0.0
    %516 = vmatpush1.msra.mxu0 0.0
    %517 = vmatprep.subr.mxu0 0.0
    %518 = vmatpush1.msra.mxu0 0.0
    %519 = vmatprep.subr.mxu0 0.0
    %520 = vmatpush1.msra.mxu0 0.0
    %521 = vmatprep.subr.mxu0 0.0
    %522 = vmatpush1.msra.mxu0 0.0
    %523 = vmatprep.subr.mxu0 0.0
    %524 = vmatpush1.msra.mxu0 0.0
    %525 = vmatprep.subr.mxu0 0.0
    %526 = vmatpush1.msra.mxu0 0.0
    %527 = vmatprep.subr.mxu0 0.0
    %528 = vmatpush1.msra.mxu0 0.0
    %529 = vmatprep.subr.mxu0 0.0
    %530 = vmatpush1.msra.mxu0 0.0
    %531 = vmatprep.subr.mxu0 0.0
    %532 = vmatpush1.msra.mxu0 0.0
    %533 = vmatprep.mubr.f32.mxu0 0.0
    %534 = vmatmul.mubr.f32.gmra.mrb[0].mxu0 %v467
    %v535 = vpop.f32.mrb[0].mxu0
    %v536 = vadd.f32 0.0, %v535
    %v537 = vpop.f32.mrb[0].mxu0
    %538 = vdwg.mxu0
    %v539 = vadd.f32 %v466, %v536
    %v540 = vxor.u32 %v539, 2147483648
    %v541 = vmul.f32 %v540, 1.442695
    %v542 = vpow.pop %v541
    %v543 = vadd.f32 %v542, 1.0
    %v544 = vrcp.pop %v543
    %v545 = vmul.f32 1.0, %v544
    %v546 = vtanh.pop %v539
    %v547 = vmul.f32 %v545, %v452
    %549 = vrot.lane.b32.xlu0 %v546, 64
    %v550 = vpop.permute.xlu0 %549
    %v552 = vmul.f32 %v545, %v550
    %554 = vrot.lane.b32.xlu0 %v552, 32
    %v555 = vpop.permute.xlu0 %554
    %v557 = vadd.f32 %v547, %v555
    %v558 = vtanh.pop %v557
    %560 = vrot.lane.b32.xlu0 %v558, 64
    %v561 = vpop.permute.xlu0 %560
    %v563 = vmul.f32 %v545, %v561
    %565 = vrot.lane.b32.xlu0 %v563, 32
    %v566 = vpop.permute.xlu0 %565
    %s568 = scalar_lea.vmem [#allocation3], 4
    %569 = vst.msk [vmem:[%s568] sm:$0x3] %vm358, %v566
    %s570 = scalar_lea.vmem [#allocation2], 6
    %v571 = vld [vmem:[%s570] sm:$0x3]
    %v572 = vsel %vm255, %v566, 0
    %574 = vmatprep.subr.mxu0 0.0
    %575 = vmatpush1.msra.mxu0 %v250
    %576 = vmatprep.subr.mxu0 0.0
    %577 = vmatpush1.msra.mxu0 %v251
    %578 = vmatprep.subr.mxu0 0.0
    %579 = vmatpush1.msra.mxu0 %v252
    %580 = vmatprep.subr.mxu0 0.0
    %581 = vmatpush1.msra.mxu0 %v253
    %582 = vmatprep.subr.mxu0 0.0
    %583 = vmatpush1.msra.mxu0 0.0
    %584 = vmatprep.subr.mxu0 0.0
    %585 = vmatpush1.msra.mxu0 0.0
    %586 = vmatprep.subr.mxu0 0.0
    %587 = vmatpush1.msra.mxu0 0.0
    %588 = vmatprep.subr.mxu0 0.0
    %589 = vmatpush1.msra.mxu0 0.0
    %590 = vmatprep.subr.mxu0 0.0
    %591 = vmatpush1.msra.mxu0 0.0
    %592 = vmatprep.subr.mxu0 0.0
    %593 = vmatpush1.msra.mxu0 0.0
    %594 = vmatprep.subr.mxu0 0.0
    %595 = vmatpush1.msra.mxu0 0.0
    %596 = vmatprep.subr.mxu0 0.0
    %597 = vmatpush1.msra.mxu0 0.0
    %598 = vmatprep.subr.mxu0 0.0
    %599 = vmatpush1.msra.mxu0 0.0
    %600 = vmatprep.subr.mxu0 0.0
    %601 = vmatpush1.msra.mxu0 0.0
    %602 = vmatprep.subr.mxu0 0.0
    %603 = vmatpush1.msra.mxu0 0.0
    %604 = vmatprep.subr.mxu0 0.0
    %605 = vmatpush1.msra.mxu0 0.0
    %606 = vmatprep.subr.mxu0 0.0
    %607 = vmatpush1.msra.mxu0 0.0
    %608 = vmatprep.subr.mxu0 0.0
    %609 = vmatpush1.msra.mxu0 0.0
    %610 = vmatprep.subr.mxu0 0.0
    %611 = vmatpush1.msra.mxu0 0.0
    %612 = vmatprep.subr.mxu0 0.0
    %613 = vmatpush1.msra.mxu0 0.0
    %614 = vmatprep.subr.mxu0 0.0
    %615 = vmatpush1.msra.mxu0 0.0
    %616 = vmatprep.subr.mxu0 0.0
    %617 = vmatpush1.msra.mxu0 0.0
    %618 = vmatprep.subr.mxu0 0.0
    %619 = vmatpush1.msra.mxu0 0.0
    %620 = vmatprep.subr.mxu0 0.0
    %621 = vmatpush1.msra.mxu0 0.0
    %622 = vmatprep.subr.mxu0 0.0
    %623 = vmatpush1.msra.mxu0 0.0
    %624 = vmatprep.subr.mxu0 0.0
    %625 = vmatpush1.msra.mxu0 0.0
    %626 = vmatprep.subr.mxu0 0.0
    %627 = vmatpush1.msra.mxu0 0.0
    %628 = vmatprep.subr.mxu0 0.0
    %629 = vmatpush1.msra.mxu0 0.0
    %630 = vmatprep.subr.mxu0 0.0
    %631 = vmatpush1.msra.mxu0 0.0
    %632 = vmatprep.subr.mxu0 0.0
    %633 = vmatpush1.msra.mxu0 0.0
    %634 = vmatprep.subr.mxu0 0.0
    %635 = vmatpush1.msra.mxu0 0.0
    %636 = vmatprep.subr.mxu0 0.0
    %637 = vmatpush1.msra.mxu0 0.0
    %638 = vmatprep.mubr.f32.mxu0 0.0
    %639 = vmatmul.mubr.f32.gmra.mrb[0].mxu0 %v572
    %v640 = vpop.f32.mrb[0].mxu0
    %v641 = vadd.f32 0.0, %v640
    %v642 = vpop.f32.mrb[0].mxu0
    %643 = vdwg.mxu0
    %v644 = vadd.f32 %v571, %v641
    %v645 = vxor.u32 %v644, 2147483648
    %v646 = vmul.f32 %v645, 1.442695
    %v647 = vpow.pop %v646
    %v648 = vadd.f32 %v647, 1.0
    %v649 = vrcp.pop %v648
    %v650 = vmul.f32 1.0, %v649
    %v651 = vtanh.pop %v644
    %v652 = vmul.f32 %v650, %v557
    %654 = vrot.lane.b32.xlu0 %v651, 64
    %v655 = vpop.permute.xlu0 %654
    %v657 = vmul.f32 %v650, %v655
    %659 = vrot.lane.b32.xlu0 %v657, 32
    %v660 = vpop.permute.xlu0 %659
    %v662 = vadd.f32 %v652, %v660
    %v663 = vtanh.pop %v662
    %665 = vrot.lane.b32.xlu0 %v663, 64
    %v666 = vpop.permute.xlu0 %665
    %v668 = vmul.f32 %v650, %v666
    %670 = vrot.lane.b32.xlu0 %v668, 32
    %v671 = vpop.permute.xlu0 %670
    %s673 = scalar_lea.vmem [#allocation3], 6
    %674 = vst.msk [vmem:[%s673] sm:$0x3] %vm358, %v671
    %s675 = scalar_lea.vmem [#allocation2], 8
    %v676 = vld [vmem:[%s675] sm:$0x3]
    %v677 = vsel %vm255, %v671, 0
    %679 = vmatprep.subr.mxu0 0.0
    %680 = vmatpush1.msra.mxu0 %v250
    %681 = vmatprep.subr.mxu0 0.0
    %682 = vmatpush1.msra.mxu0 %v251
    %683 = vmatprep.subr.mxu0 0.0
    %684 = vmatpush1.msra.mxu0 %v252
    %685 = vmatprep.subr.mxu0 0.0
    %686 = vmatpush1.msra.mxu0 %v253
    %687 = vmatprep.subr.mxu0 0.0
    %688 = vmatpush1.msra.mxu0 0.0
    %689 = vmatprep.subr.mxu0 0.0
    %690 = vmatpush1.msra.mxu0 0.0
    %691 = vmatprep.subr.mxu0 0.0
    %692 = vmatpush1.msra.mxu0 0.0
    %693 = vmatprep.subr.mxu0 0.0
    %694 = vmatpush1.msra.mxu0 0.0
    %695 = vmatprep.subr.mxu0 0.0
    %696 = vmatpush1.msra.mxu0 0.0
    %697 = vmatprep.subr.mxu0 0.0
    %698 = vmatpush1.msra.mxu0 0.0
    %699 = vmatprep.subr.mxu0 0.0
    %700 = vmatpush1.msra.mxu0 0.0
    %701 = vmatprep.subr.mxu0 0.0
    %702 = vmatpush1.msra.mxu0 0.0
    %703 = vmatprep.subr.mxu0 0.0
    %704 = vmatpush1.msra.mxu0 0.0
    %705 = vmatprep.subr.mxu0 0.0
    %706 = vmatpush1.msra.mxu0 0.0
    %707 = vmatprep.subr.mxu0 0.0
    %708 = vmatpush1.msra.mxu0 0.0
    %709 = vmatprep.subr.mxu0 0.0
    %710 = vmatpush1.msra.mxu0 0.0
    %711 = vmatprep.subr.mxu0 0.0
    %712 = vmatpush1.msra.mxu0 0.0
    %713 = vmatprep.subr.mxu0 0.0
    %714 = vmatpush1.msra.mxu0 0.0
    %715 = vmatprep.subr.mxu0 0.0
    %716 = vmatpush1.msra.mxu0 0.0
    %717 = vmatprep.subr.mxu0 0.0
    %718 = vmatpush1.msra.mxu0 0.0
    %719 = vmatprep.subr.mxu0 0.0
    %720 = vmatpush1.msra.mxu0 0.0
    %721 = vmatprep.subr.mxu0 0.0
    %722 = vmatpush1.msra.mxu0 0.0
    %723 = vmatprep.subr.mxu0 0.0
    %724 = vmatpush1.msra.mxu0 0.0
    %725 = vmatprep.subr.mxu0 0.0
    %726 = vmatpush1.msra.mxu0 0.0
    %727 = vmatprep.subr.mxu0 0.0
    %728 = vmatpush1.msra.mxu0 0.0
    %729 = vmatprep.subr.mxu0 0.0
    %730 = vmatpush1.msra.mxu0 0.0
    %731 = vmatprep.subr.mxu0 0.0
    %732 = vmatpush1.msra.mxu0 0.0
    %733 = vmatprep.subr.mxu0 0.0
    %734 = vmatpush1.msra.mxu0 0.0
    %735 = vmatprep.subr.mxu0 0.0
    %736 = vmatpush1.msra.mxu0 0.0
    %737 = vmatprep.subr.mxu0 0.0
    %738 = vmatpush1.msra.mxu0 0.0
    %739 = vmatprep.subr.mxu0 0.0
    %740 = vmatpush1.msra.mxu0 0.0
    %741 = vmatprep.subr.mxu0 0.0
    %742 = vmatpush1.msra.mxu0 0.0
    %743 = vmatprep.mubr.f32.mxu0 0.0
    %744 = vmatmul.mubr.f32.gmra.mrb[0].mxu0 %v677
    %v745 = vpop.f32.mrb[0].mxu0
    %v746 = vadd.f32 0.0, %v745
    %v747 = vpop.f32.mrb[0].mxu0
    %748 = vdwg.mxu0
    %v749 = vadd.f32 %v676, %v746
    %v750 = vxor.u32 %v749, 2147483648
    %v751 = vmul.f32 %v750, 1.442695
    %v752 = vpow.pop %v751
    %v753 = vadd.f32 %v752, 1.0
    %v754 = vrcp.pop %v753
    %v755 = vmul.f32 1.0, %v754
    %v756 = vtanh.pop %v749
    %v757 = vmul.f32 %v755, %v662
    %759 = vrot.lane.b32.xlu0 %v756, 64
    %v760 = vpop.permute.xlu0 %759
    %v762 = vmul.f32 %v755, %v760
    %764 = vrot.lane.b32.xlu0 %v762, 32
    %v765 = vpop.permute.xlu0 %764
    %v767 = vadd.f32 %v757, %v765
    %v768 = vtanh.pop %v767
    %770 = vrot.lane.b32.xlu0 %v768, 64
    %v771 = vpop.permute.xlu0 %770
    %v773 = vmul.f32 %v755, %v771
    %775 = vrot.lane.b32.xlu0 %v773, 32
    %v776 = vpop.permute.xlu0 %775
    %s778 = scalar_lea.vmem [#allocation3], 8
    %779 = vst.msk [vmem:[%s778] sm:$0x3] %vm358, %v776
    %s780 = scalar_lea.vmem [#allocation2], 10
    %v781 = vld [vmem:[%s780] sm:$0x3]
    %v782 = vsel %vm255, %v776, 0
    %784 = vmatprep.subr.mxu0 0.0
    %785 = vmatpush1.msra.mxu0 %v250
    %786 = vmatprep.subr.mxu0 0.0
    %787 = vmatpush1.msra.mxu0 %v251
    %788 = vmatprep.subr.mxu0 0.0
    %789 = vmatpush1.msra.mxu0 %v252
    %790 = vmatprep.subr.mxu0 0.0
    %791 = vmatpush1.msra.mxu0 %v253
    %792 = vmatprep.subr.mxu0 0.0
    %793 = vmatpush1.msra.mxu0 0.0
    %794 = vmatprep.subr.mxu0 0.0
    %795 = vmatpush1.msra.mxu0 0.0
    %796 = vmatprep.subr.mxu0 0.0
    %797 = vmatpush1.msra.mxu0 0.0
    %798 = vmatprep.subr.mxu0 0.0
    %799 = vmatpush1.msra.mxu0 0.0
    %800 = vmatprep.subr.mxu0 0.0
    %801 = vmatpush1.msra.mxu0 0.0
    %802 = vmatprep.subr.mxu0 0.0
    %803 = vmatpush1.msra.mxu0 0.0
    %804 = vmatprep.subr.mxu0 0.0
    %805 = vmatpush1.msra.mxu0 0.0
    %806 = vmatprep.subr.mxu0 0.0
    %807 = vmatpush1.msra.mxu0 0.0
    %808 = vmatprep.subr.mxu0 0.0
    %809 = vmatpush1.msra.mxu0 0.0
    %810 = vmatprep.subr.mxu0 0.0
    %811 = vmatpush1.msra.mxu0 0.0
    %812 = vmatprep.subr.mxu0 0.0
    %813 = vmatpush1.msra.mxu0 0.0
    %814 = vmatprep.subr.mxu0 0.0
    %815 = vmatpush1.msra.mxu0 0.0
    %816 = vmatprep.subr.mxu0 0.0
    %817 = vmatpush1.msra.mxu0 0.0
    %818 = vmatprep.subr.mxu0 0.0
    %819 = vmatpush1.msra.mxu0 0.0
    %820 = vmatprep.subr.mxu0 0.0
    %821 = vmatpush1.msra.mxu0 0.0
    %822 = vmatprep.subr.mxu0 0.0
    %823 = vmatpush1.msra.mxu0 0.0
    %824 = vmatprep.subr.mxu0 0.0
    %825 = vmatpush1.msra.mxu0 0.0
    %826 = vmatprep.subr.mxu0 0.0
    %827 = vmatpush1.msra.mxu0 0.0
    %828 = vmatprep.subr.mxu0 0.0
    %829 = vmatpush1.msra.mxu0 0.0
    %830 = vmatprep.subr.mxu0 0.0
    %831 = vmatpush1.msra.mxu0 0.0
    %832 = vmatprep.subr.mxu0 0.0
    %833 = vmatpush1.msra.mxu0 0.0
    %834 = vmatprep.subr.mxu0 0.0
    %835 = vmatpush1.msra.mxu0 0.0
    %836 = vmatprep.subr.mxu0 0.0
    %837 = vmatpush1.msra.mxu0 0.0
    %838 = vmatprep.subr.mxu0 0.0
    %839 = vmatpush1.msra.mxu0 0.0
    %840 = vmatprep.subr.mxu0 0.0
    %841 = vmatpush1.msra.mxu0 0.0
    %842 = vmatprep.subr.mxu0 0.0
    %843 = vmatpush1.msra.mxu0 0.0
    %844 = vmatprep.subr.mxu0 0.0
    %845 = vmatpush1.msra.mxu0 0.0
    %846 = vmatprep.subr.mxu0 0.0
    %847 = vmatpush1.msra.mxu0 0.0
    %848 = vmatprep.mubr.f32.mxu0 0.0
    %849 = vmatmul.mubr.f32.gmra.mrb[0].mxu0 %v782
    %v850 = vpop.f32.mrb[0].mxu0
    %v851 = vadd.f32 0.0, %v850
    %v852 = vpop.f32.mrb[0].mxu0
    %853 = vdwg.mxu0
    %v854 = vadd.f32 %v781, %v851
    %v855 = vxor.u32 %v854, 2147483648
    %v856 = vmul.f32 %v855, 1.442695
    %v857 = vpow.pop %v856
    %v858 = vadd.f32 %v857, 1.0
    %v859 = vrcp.pop %v858
    %v860 = vmul.f32 1.0, %v859
    %v861 = vtanh.pop %v854
    %v862 = vmul.f32 %v860, %v767
    %864 = vrot.lane.b32.xlu0 %v861, 64
    %v865 = vpop.permute.xlu0 %864
    %v867 = vmul.f32 %v860, %v865
    %869 = vrot.lane.b32.xlu0 %v867, 32
    %v870 = vpop.permute.xlu0 %869
    %v872 = vadd.f32 %v862, %v870
    %v873 = vtanh.pop %v872
    %875 = vrot.lane.b32.xlu0 %v873, 64
    %v876 = vpop.permute.xlu0 %875
    %v878 = vmul.f32 %v860, %v876
    %880 = vrot.lane.b32.xlu0 %v878, 32
    %v881 = vpop.permute.xlu0 %880
    %s883 = scalar_lea.vmem [#allocation3], 10
    %884 = vst.msk [vmem:[%s883] sm:$0x3] %vm358, %v881
    %s885 = scalar_lea.vmem [#allocation2], 12
    %v886 = vld [vmem:[%s885] sm:$0x3]
    %v887 = vsel %vm255, %v881, 0
    %889 = vmatprep.subr.mxu0 0.0
    %890 = vmatpush1.msra.mxu0 %v250
    %891 = vmatprep.subr.mxu0 0.0
    %892 = vmatpush1.msra.mxu0 %v251
    %893 = vmatprep.subr.mxu0 0.0
    %894 = vmatpush1.msra.mxu0 %v252
    %895 = vmatprep.subr.mxu0 0.0
    %896 = vmatpush1.msra.mxu0 %v253
    %897 = vmatprep.subr.mxu0 0.0
    %898 = vmatpush1.msra.mxu0 0.0
    %899 = vmatprep.subr.mxu0 0.0
    %900 = vmatpush1.msra.mxu0 0.0
    %901 = vmatprep.subr.mxu0 0.0
    %902 = vmatpush1.msra.mxu0 0.0
    %903 = vmatprep.subr.mxu0 0.0
    %904 = vmatpush1.msra.mxu0 0.0
    %905 = vmatprep.subr.mxu0 0.0
    %906 = vmatpush1.msra.mxu0 0.0
    %907 = vmatprep.subr.mxu0 0.0
    %908 = vmatpush1.msra.mxu0 0.0
    %909 = vmatprep.subr.mxu0 0.0
    %910 = vmatpush1.msra.mxu0 0.0
    %911 = vmatprep.subr.mxu0 0.0
    %912 = vmatpush1.msra.mxu0 0.0
    %913 = vmatprep.subr.mxu0 0.0
    %914 = vmatpush1.msra.mxu0 0.0
    %915 = vmatprep.subr.mxu0 0.0
    %916 = vmatpush1.msra.mxu0 0.0
    %917 = vmatprep.subr.mxu0 0.0
    %918 = vmatpush1.msra.mxu0 0.0
    %919 = vmatprep.subr.mxu0 0.0
    %920 = vmatpush1.msra.mxu0 0.0
    %921 = vmatprep.subr.mxu0 0.0
    %922 = vmatpush1.msra.mxu0 0.0
    %923 = vmatprep.subr.mxu0 0.0
    %924 = vmatpush1.msra.mxu0 0.0
    %925 = vmatprep.subr.mxu0 0.0
    %926 = vmatpush1.msra.mxu0 0.0
    %927 = vmatprep.subr.mxu0 0.0
    %928 = vmatpush1.msra.mxu0 0.0
    %929 = vmatprep.subr.mxu0 0.0
    %930 = vmatpush1.msra.mxu0 0.0
    %931 = vmatprep.subr.mxu0 0.0
    %932 = vmatpush1.msra.mxu0 0.0
    %933 = vmatprep.subr.mxu0 0.0
    %934 = vmatpush1.msra.mxu0 0.0
    %935 = vmatprep.subr.mxu0 0.0
    %936 = vmatpush1.msra.mxu0 0.0
    %937 = vmatprep.subr.mxu0 0.0
    %938 = vmatpush1.msra.mxu0 0.0
    %939 = vmatprep.subr.mxu0 0.0
    %940 = vmatpush1.msra.mxu0 0.0
    %941 = vmatprep.subr.mxu0 0.0
    %942 = vmatpush1.msra.mxu0 0.0
    %943 = vmatprep.subr.mxu0 0.0
    %944 = vmatpush1.msra.mxu0 0.0
    %945 = vmatprep.subr.mxu0 0.0
    %946 = vmatpush1.msra.mxu0 0.0
    %947 = vmatprep.subr.mxu0 0.0
    %948 = vmatpush1.msra.mxu0 0.0
    %949 = vmatprep.subr.mxu0 0.0
    %950 = vmatpush1.msra.mxu0 0.0
    %951 = vmatprep.subr.mxu0 0.0
    %952 = vmatpush1.msra.mxu0 0.0
    %953 = vmatprep.mubr.f32.mxu0 0.0
    %954 = vmatmul.mubr.f32.gmra.mrb[0].mxu0 %v887
    %v955 = vpop.f32.mrb[0].mxu0
    %v956 = vadd.f32 0.0, %v955
    %v957 = vpop.f32.mrb[0].mxu0
    %958 = vdwg.mxu0
    %v959 = vadd.f32 %v886, %v956
    %v960 = vxor.u32 %v959, 2147483648
    %v961 = vmul.f32 %v960, 1.442695
    %v962 = vpow.pop %v961
    %v963 = vadd.f32 %v962, 1.0
    %v964 = vrcp.pop %v963
    %v965 = vmul.f32 1.0, %v964
    %v966 = vtanh.pop %v959
    %v967 = vmul.f32 %v965, %v872
    %969 = vrot.lane.b32.xlu0 %v966, 64
    %v970 = vpop.permute.xlu0 %969
    %v972 = vmul.f32 %v965, %v970
    %974 = vrot.lane.b32.xlu0 %v972, 32
    %v975 = vpop.permute.xlu0 %974
    %v977 = vadd.f32 %v967, %v975
    %v978 = vtanh.pop %v977
    %980 = vrot.lane.b32.xlu0 %v978, 64
    %v981 = vpop.permute.xlu0 %980
    %v983 = vmul.f32 %v965, %v981
    %985 = vrot.lane.b32.xlu0 %v983, 32
    %v986 = vpop.permute.xlu0 %985
    %s988 = scalar_lea.vmem [#allocation3], 12
    %989 = vst.msk [vmem:[%s988] sm:$0x3] %vm358, %v986
    %s990 = scalar_lea.vmem [#allocation2], 14
    %v991 = vld [vmem:[%s990] sm:$0x3]
    %v992 = vsel %vm255, %v986, 0
    %994 = vmatprep.subr.mxu0 0.0
    %995 = vmatpush1.msra.mxu0 %v250
    %996 = vmatprep.subr.mxu0 0.0
    %997 = vmatpush1.msra.mxu0 %v251
    %998 = vmatprep.subr.mxu0 0.0
    %999 = vmatpush1.msra.mxu0 %v252
    %1000 = vmatprep.subr.mxu0 0.0
    %1001 = vmatpush1.msra.mxu0 %v253
    %1002 = vmatprep.subr.mxu0 0.0
    %1003 = vmatpush1.msra.mxu0 0.0
    %1004 = vmatprep.subr.mxu0 0.0
    %1005 = vmatpush1.msra.mxu0 0.0
    %1006 = vmatprep.subr.mxu0 0.0
    %1007 = vmatpush1.msra.mxu0 0.0
    %1008 = vmatprep.subr.mxu0 0.0
    %1009 = vmatpush1.msra.mxu0 0.0
    %1010 = vmatprep.subr.mxu0 0.0
    %1011 = vmatpush1.msra.mxu0 0.0
    %1012 = vmatprep.subr.mxu0 0.0
    %1013 = vmatpush1.msra.mxu0 0.0
    %1014 = vmatprep.subr.mxu0 0.0
    %1015 = vmatpush1.msra.mxu0 0.0
    %1016 = vmatprep.subr.mxu0 0.0
    %1017 = vmatpush1.msra.mxu0 0.0
    %1018 = vmatprep.subr.mxu0 0.0
    %1019 = vmatpush1.msra.mxu0 0.0
    %1020 = vmatprep.subr.mxu0 0.0
    %1021 = vmatpush1.msra.mxu0 0.0
    %1022 = vmatprep.subr.mxu0 0.0
    %1023 = vmatpush1.msra.mxu0 0.0
    %1024 = vmatprep.subr.mxu0 0.0
    %1025 = vmatpush1.msra.mxu0 0.0
    %1026 = vmatprep.subr.mxu0 0.0
    %1027 = vmatpush1.msra.mxu0 0.0
    %1028 = vmatprep.subr.mxu0 0.0
    %1029 = vmatpush1.msra.mxu0 0.0
    %1030 = vmatprep.subr.mxu0 0.0
    %1031 = vmatpush1.msra.mxu0 0.0
    %1032 = vmatprep.subr.mxu0 0.0
    %1033 = vmatpush1.msra.mxu0 0.0
    %1034 = vmatprep.subr.mxu0 0.0
    %1035 = vmatpush1.msra.mxu0 0.0
    %1036 = vmatprep.subr.mxu0 0.0
    %1037 = vmatpush1.msra.mxu0 0.0
    %1038 = vmatprep.subr.mxu0 0.0
    %1039 = vmatpush1.msra.mxu0 0.0
    %1040 = vmatprep.subr.mxu0 0.0
    %1041 = vmatpush1.msra.mxu0 0.0
    %1042 = vmatprep.subr.mxu0 0.0
    %1043 = vmatpush1.msra.mxu0 0.0
    %1044 = vmatprep.subr.mxu0 0.0
    %1045 = vmatpush1.msra.mxu0 0.0
    %1046 = vmatprep.subr.mxu0 0.0
    %1047 = vmatpush1.msra.mxu0 0.0
    %1048 = vmatprep.subr.mxu0 0.0
    %1049 = vmatpush1.msra.mxu0 0.0
    %1050 = vmatprep.subr.mxu0 0.0
    %1051 = vmatpush1.msra.mxu0 0.0
    %1052 = vmatprep.subr.mxu0 0.0
    %1053 = vmatpush1.msra.mxu0 0.0
    %1054 = vmatprep.subr.mxu0 0.0
    %1055 = vmatpush1.msra.mxu0 0.0
    %1056 = vmatprep.subr.mxu0 0.0
    %1057 = vmatpush1.msra.mxu0 0.0
    %1058 = vmatprep.mubr.f32.mxu0 0.0
    %1059 = vmatmul.mubr.f32.gmra.mrb[0].mxu0 %v992
    %v1060 = vpop.f32.mrb[0].mxu0
    %v1061 = vadd.f32 0.0, %v1060
    %v1062 = vpop.f32.mrb[0].mxu0
    %1063 = vdwg.mxu0
    %v1064 = vadd.f32 %v991, %v1061
    %v1065 = vxor.u32 %v1064, 2147483648
    %v1066 = vmul.f32 %v1065, 1.442695
    %v1067 = vpow.pop %v1066
    %v1068 = vadd.f32 %v1067, 1.0
    %v1069 = vrcp.pop %v1068
    %v1070 = vmul.f32 1.0, %v1069
    %v1071 = vtanh.pop %v1064
    %v1072 = vmul.f32 %v1070, %v977
    %1074 = vrot.lane.b32.xlu0 %v1071, 64
    %v1075 = vpop.permute.xlu0 %1074
    %v1077 = vmul.f32 %v1070, %v1075
    %1079 = vrot.lane.b32.xlu0 %v1077, 32
    %v1080 = vpop.permute.xlu0 %1079
    %v1082 = vadd.f32 %v1072, %v1080
    %v1083 = vtanh.pop %v1082
    %1085 = vrot.lane.b32.xlu0 %v1083, 64
    %v1086 = vpop.permute.xlu0 %1085
    %v1088 = vmul.f32 %v1070, %v1086
    %1090 = vrot.lane.b32.xlu0 %v1088, 32
    %v1091 = vpop.permute.xlu0 %1090
    %s1093 = scalar_lea.vmem [#allocation3], 14
    %1094 = vst.msk [vmem:[%s1093] sm:$0x3] %vm358, %v1091
    %v1095 = vld [vmem:[#allocation3] sm:$0x3]
    %v1096 = vld [vmem:[#allocation3 + $0x2] sm:$0x3]
    %v1097 = vld [vmem:[#allocation3 + $0x4] sm:$0x3]
    %v1098 = vld [vmem:[#allocation3 + $0x6] sm:$0x3]
    %v1099 = vld [vmem:[#allocation3 + $0x8] sm:$0x3]
    %v1100 = vld [vmem:[#allocation3 + $0xa] sm:$0x3]
    %v1101 = vld [vmem:[#allocation3 + $0xc] sm:$0x3]
    %v1102 = vld [vmem:[#allocation3 + $0xe] sm:$0x3]
    %v1103 = vld [vmem:[%s4] sm:$0xff]
    %v1104 = vld [vmem:[%s4 + $0x8] sm:$0xff]
    %v1105 = vld [vmem:[%s4 + $0x10] sm:$0xff]
    %v1106 = vld [vmem:[%s4 + $0x18] sm:$0xff]
    %v1107 = vld [vmem:[%s6] sm:$0x1]
    %v1109 = vlaneseq
    %v1110 = vshrl.u32 %v1109, 7
    %v1111 = vsub.s32 0, %v1110
    %v1112 = vrot.slane %v1107, %v1111
    %v1122 = vcombine.low %v1095, %v1096
    %v1123 = vcombine.low %v1097, %v1098
    %v1125 = vunpack.c.l.s4 1983009808
    %v1126 = vunpack.c.0.s8 %v1125
    %v1127 = vlaneseq
    %v1128 = vshrl.u32 %v1127, 7
    %v1129 = vsub.s32 %v1126, %v1128
    %v1130 = vrot.slane %v1122, %v1129
    %v1132 = vunpack.c.l.s4 1983009808
    %v1133 = vunpack.c.0.s8 %v1132
    %v1134 = vlaneseq
    %v1135 = vshrl.u32 %v1134, 7
    %v1136 = vsub.s32 %v1133, %v1135
    %v1137 = vrot.slane %v1123, %v1136
    %v1138 = vcombine.low %v1130, %v1137
    %v1139 = vcombine.low %v1099, %v1100
    %v1140 = vcombine.low %v1101, %v1102
    %v1142 = vunpack.c.l.s4 1983009808
    %v1143 = vunpack.c.0.s8 %v1142
    %v1144 = vlaneseq
    %v1145 = vshrl.u32 %v1144, 7
    %v1146 = vsub.s32 %v1143, %v1145
    %v1147 = vrot.slane %v1139, %v1146
    %v1149 = vunpack.c.l.s4 1983009808
    %v1150 = vunpack.c.0.s8 %v1149
    %v1151 = vlaneseq
    %v1152 = vshrl.u32 %v1151, 7
    %v1153 = vsub.s32 %v1150, %v1152
    %v1154 = vrot.slane %v1140, %v1153
    %v1155 = vcombine.low %v1147, %v1154
    %v1156 = vsel %vm255, %v1138, 0
    %v1158 = vsel %vm255, %v1155, 0
    %1160 = vmatprep.subr.mxu0 0.0
    %1161 = vmatpush1.msra.mxu0 %v1103
    %1162 = vmatprep.subr.mxu0 0.0
    %1163 = vmatpush1.msra.mxu0 %v1104
    %1164 = vmatprep.subr.mxu0 0.0
    %1165 = vmatpush1.msra.mxu0 %v1105
    %1166 = vmatprep.subr.mxu0 0.0
    %1167 = vmatpush1.msra.mxu0 %v1106
    %1168 = vmatprep.subr.mxu0 0.0
    %1169 = vmatpush1.msra.mxu0 0.0
    %1170 = vmatprep.subr.mxu0 0.0
    %1171 = vmatpush1.msra.mxu0 0.0
    %1172 = vmatprep.subr.mxu0 0.0
    %1173 = vmatpush1.msra.mxu0 0.0
    %1174 = vmatprep.subr.mxu0 0.0
    %1175 = vmatpush1.msra.mxu0 0.0
    %1176 = vmatprep.subr.mxu0 0.0
    %1177 = vmatpush1.msra.mxu0 0.0
    %1178 = vmatprep.subr.mxu0 0.0
    %1179 = vmatpush1.msra.mxu0 0.0
    %1180 = vmatprep.subr.mxu0 0.0
    %1181 = vmatpush1.msra.mxu0 0.0
    %1182 = vmatprep.subr.mxu0 0.0
    %1183 = vmatpush1.msra.mxu0 0.0
    %1184 = vmatprep.subr.mxu0 0.0
    %1185 = vmatpush1.msra.mxu0 0.0
    %1186 = vmatprep.subr.mxu0 0.0
    %1187 = vmatpush1.msra.mxu0 0.0
    %1188 = vmatprep.subr.mxu0 0.0
    %1189 = vmatpush1.msra.mxu0 0.0
    %1190 = vmatprep.subr.mxu0 0.0
    %1191 = vmatpush1.msra.mxu0 0.0
    %1192 = vmatprep.subr.mxu0 0.0
    %1193 = vmatpush1.msra.mxu0 0.0
    %1194 = vmatprep.subr.mxu0 0.0
    %1195 = vmatpush1.msra.mxu0 0.0
    %1196 = vmatprep.subr.mxu0 0.0
    %1197 = vmatpush1.msra.mxu0 0.0
    %1198 = vmatprep.subr.mxu0 0.0
    %1199 = vmatpush1.msra.mxu0 0.0
    %1200 = vmatprep.subr.mxu0 0.0
    %1201 = vmatpush1.msra.mxu0 0.0
    %1202 = vmatprep.subr.mxu0 0.0
    %1203 = vmatpush1.msra.mxu0 0.0
    %1204 = vmatprep.subr.mxu0 0.0
    %1205 = vmatpush1.msra.mxu0 0.0
    %1206 = vmatprep.subr.mxu0 0.0
    %1207 = vmatpush1.msra.mxu0 0.0
    %1208 = vmatprep.subr.mxu0 0.0
    %1209 = vmatpush1.msra.mxu0 0.0
    %1210 = vmatprep.subr.mxu0 0.0
    %1211 = vmatpush1.msra.mxu0 0.0
    %1212 = vmatprep.subr.mxu0 0.0
    %1213 = vmatpush1.msra.mxu0 0.0
    %1214 = vmatprep.subr.mxu0 0.0
    %1215 = vmatpush1.msra.mxu0 0.0
    %1216 = vmatprep.subr.mxu0 0.0
    %1217 = vmatpush1.msra.mxu0 0.0
    %1218 = vmatprep.subr.mxu0 0.0
    %1219 = vmatpush1.msra.mxu0 0.0
    %1220 = vmatprep.subr.mxu0 0.0
    %1221 = vmatpush1.msra.mxu0 0.0
    %1222 = vmatprep.subr.mxu0 0.0
    %1223 = vmatpush1.msra.mxu0 0.0
    %1224 = vmatprep.mubr.f32.mxu0 0.0
    %1225 = vmatmul.mubr.f32.gmra.mrb[0].mxu0 %v1156
    %v1226 = vpop.f32.mrb[0].mxu0
    %v1227 = vadd.f32 %v1112, %v1226
    %v1228 = vpop.f32.mrb[0].mxu0
    %1229 = vmatprep.mubr.f32.mxu0 0.0
    %1230 = vmatmul.mubr.f32.gmra.mrb[0].mxu0 %v1158
    %v1231 = vpop.f32.mrb[0].mxu0
    %v1232 = vadd.f32 %v1112, %v1231
    %v1233 = vpop.f32.mrb[0].mxu0
    %1234 = vdwg.mxu0
    %v1237 = vcombine.high %v1227, %v1227
    %v1239 = vunpack.c.l.s4 1983009808
    %v1240 = vunpack.c.0.s8 %v1239
    %v1241 = vlaneseq
    %v1242 = vshrl.u32 %v1241, 7
    %v1243 = vsub.s32 %v1240, %v1242
    %v1244 = vrot.slane %v1227, %v1243
    %v1246 = vunpack.c.l.s4 1983009808
    %v1247 = vunpack.c.0.s8 %v1246
    %v1248 = vlaneseq
    %v1249 = vshrl.u32 %v1248, 7
    %v1250 = vsub.s32 %v1247, %v1249
    %v1251 = vrot.slane %v1237, %v1250
    %v1252 = vcombine.high %v1244, %v1244
    %v1253 = vcombine.high %v1251, %v1251
    %v1254 = vcombine.high %v1232, %v1232
    %v1256 = vunpack.c.l.s4 1983009808
    %v1257 = vunpack.c.0.s8 %v1256
    %v1258 = vlaneseq
    %v1259 = vshrl.u32 %v1258, 7
    %v1260 = vsub.s32 %v1257, %v1259
    %v1261 = vrot.slane %v1232, %v1260
    %v1263 = vunpack.c.l.s4 1983009808
    %v1264 = vunpack.c.0.s8 %v1263
    %v1265 = vlaneseq
    %v1266 = vshrl.u32 %v1265, 7
    %v1267 = vsub.s32 %v1264, %v1266
    %v1268 = vrot.slane %v1254, %v1267
    %v1269 = vcombine.high %v1261, %v1261
    %v1270 = vcombine.high %v1268, %v1268
    %1279 = vst [vmem:[#allocation2] sm:$0x3] %v1244
    %1280 = vst [vmem:[#allocation2 + $0x2] sm:$0x3] %v1252
    %1281 = vst [vmem:[#allocation2 + $0x4] sm:$0x3] %v1251
    %1282 = vst [vmem:[#allocation2 + $0x6] sm:$0x3] %v1253
    %1283 = vst [vmem:[#allocation2 + $0x8] sm:$0x3] %v1261
    %1284 = vst [vmem:[#allocation2 + $0xa] sm:$0x3] %v1269
    %1285 = vst [vmem:[#allocation2 + $0xc] sm:$0x3] %v1268
    %1286 = vst [vmem:[#allocation2 + $0xe] sm:$0x3] %v1270
    %v1287 = vld [vmem:[%s5] sm:$0xff]
    %v1288 = vld [vmem:[%s5 + $0x8] sm:$0xff]
    %v1289 = vld [vmem:[%s5 + $0x10] sm:$0xff]
    %v1290 = vld [vmem:[%s5 + $0x18] sm:$0xff]
    %v1291 = vld [vmem:[#allocation2] sm:$0x3]
    %1292 = vmatprep.subr.mxu0 0.0
    %1293 = vmatpush1.msra.mxu0 %v1287
    %1294 = vmatprep.subr.mxu0 0.0
    %1295 = vmatpush1.msra.mxu0 %v1288
    %1296 = vmatprep.subr.mxu0 0.0
    %1297 = vmatpush1.msra.mxu0 %v1289
    %1298 = vmatprep.subr.mxu0 0.0
    %1299 = vmatpush1.msra.mxu0 %v1290
    %1300 = vmatprep.subr.mxu0 0.0
    %1301 = vmatpush1.msra.mxu0 0.0
    %1302 = vmatprep.subr.mxu0 0.0
    %1303 = vmatpush1.msra.mxu0 0.0
    %1304 = vmatprep.subr.mxu0 0.0
    %1305 = vmatpush1.msra.mxu0 0.0
    %1306 = vmatprep.subr.mxu0 0.0
    %1307 = vmatpush1.msra.mxu0 0.0
    %1308 = vmatprep.subr.mxu0 0.0
    %1309 = vmatpush1.msra.mxu0 0.0
    %1310 = vmatprep.subr.mxu0 0.0
    %1311 = vmatpush1.msra.mxu0 0.0
    %1312 = vmatprep.subr.mxu0 0.0
    %1313 = vmatpush1.msra.mxu0 0.0
    %1314 = vmatprep.subr.mxu0 0.0
    %1315 = vmatpush1.msra.mxu0 0.0
    %1316 = vmatprep.subr.mxu0 0.0
    %1317 = vmatpush1.msra.mxu0 0.0
    %1318 = vmatprep.subr.mxu0 0.0
    %1319 = vmatpush1.msra.mxu0 0.0
    %1320 = vmatprep.subr.mxu0 0.0
    %1321 = vmatpush1.msra.mxu0 0.0
    %1322 = vmatprep.subr.mxu0 0.0
    %1323 = vmatpush1.msra.mxu0 0.0
    %1324 = vmatprep.subr.mxu0 0.0
    %1325 = vmatpush1.msra.mxu0 0.0
    %1326 = vmatprep.subr.mxu0 0.0
    %1327 = vmatpush1.msra.mxu0 0.0
    %1328 = vmatprep.subr.mxu0 0.0
    %1329 = vmatpush1.msra.mxu0 0.0
    %1330 = vmatprep.subr.mxu0 0.0
    %1331 = vmatpush1.msra.mxu0 0.0
    %1332 = vmatprep.subr.mxu0 0.0
    %1333 = vmatpush1.msra.mxu0 0.0
    %1334 = vmatprep.subr.mxu0 0.0
    %1335 = vmatpush1.msra.mxu0 0.0
    %1336 = vmatprep.subr.mxu0 0.0
    %1337 = vmatpush1.msra.mxu0 0.0
    %1338 = vmatprep.subr.mxu0 0.0
    %1339 = vmatpush1.msra.mxu0 0.0
    %1340 = vmatprep.subr.mxu0 0.0
    %1341 = vmatpush1.msra.mxu0 0.0
    %1342 = vmatprep.subr.mxu0 0.0
    %1343 = vmatpush1.msra.mxu0 0.0
    %1344 = vmatprep.subr.mxu0 0.0
    %1345 = vmatpush1.msra.mxu0 0.0
    %1346 = vmatprep.subr.mxu0 0.0
    %1347 = vmatpush1.msra.mxu0 0.0
    %1348 = vmatprep.subr.mxu0 0.0
    %1349 = vmatpush1.msra.mxu0 0.0
    %1350 = vmatprep.subr.mxu0 0.0
    %1351 = vmatpush1.msra.mxu0 0.0
    %1352 = vmatprep.subr.mxu0 0.0
    %1353 = vmatpush1.msra.mxu0 0.0
    %1354 = vmatprep.subr.mxu0 0.0
    %1355 = vmatpush1.msra.mxu0 0.0
    %1356 = vmatprep.mubr.f32.mxu0 0.0
    %1357 = vmatmul.mubr.f32.gmra.mrb[0].mxu0 %v257
    %v1358 = vpop.f32.mrb[0].mxu0
    %v1359 = vadd.f32 0.0, %v1358
    %v1360 = vpop.f32.mrb[0].mxu0
    %1361 = vdwg.mxu0
    %v1362 = vadd.f32 %v1291, %v1359
    %v1363 = vxor.u32 %v1362, 2147483648
    %v1364 = vmul.f32 %v1363, 1.442695
    %v1365 = vpow.pop %v1364
    %v1366 = vadd.f32 %v1365, 1.0
    %v1367 = vrcp.pop %v1366
    %v1368 = vmul.f32 1.0, %v1367
    %v1369 = vtanh.pop %v1362
    %v1370 = vmul.f32 %v1368, 0.0
    %1372 = vrot.lane.b32.xlu0 %v1369, 64
    %v1373 = vpop.permute.xlu0 %1372
    %v1375 = vmul.f32 %v1368, %v1373
    %1377 = vrot.lane.b32.xlu0 %v1375, 32
    %v1378 = vpop.permute.xlu0 %1377
    %v1380 = vadd.f32 %v1370, %v1378
    %v1381 = vtanh.pop %v1380
    %1383 = vrot.lane.b32.xlu0 %v1381, 64
    %v1384 = vpop.permute.xlu0 %1383
    %v1386 = vmul.f32 %v1368, %v1384
    %v1387 = vld [vmem:[%s360] sm:$0x3]
    %1389 = vrot.lane.b32.xlu0 %v1386, 32
    %v1390 = vpop.permute.xlu0 %1389
    %v1391 = vsel %vm255, %v1390, 0
    %1393 = vmatprep.subr.mxu0 0.0
    %1394 = vmatpush1.msra.mxu0 %v1287
    %1395 = vmatprep.subr.mxu0 0.0
    %1396 = vmatpush1.msra.mxu0 %v1288
    %1397 = vmatprep.subr.mxu0 0.0
    %1398 = vmatpush1.msra.mxu0 %v1289
    %1399 = vmatprep.subr.mxu0 0.0
    %1400 = vmatpush1.msra.mxu0 %v1290
    %1401 = vmatprep.subr.mxu0 0.0
    %1402 = vmatpush1.msra.mxu0 0.0
    %1403 = vmatprep.subr.mxu0 0.0
    %1404 = vmatpush1.msra.mxu0 0.0
    %1405 = vmatprep.subr.mxu0 0.0
    %1406 = vmatpush1.msra.mxu0 0.0
    %1407 = vmatprep.subr.mxu0 0.0
    %1408 = vmatpush1.msra.mxu0 0.0
    %1409 = vmatprep.subr.mxu0 0.0
    %1410 = vmatpush1.msra.mxu0 0.0
    %1411 = vmatprep.subr.mxu0 0.0
    %1412 = vmatpush1.msra.mxu0 0.0
    %1413 = vmatprep.subr.mxu0 0.0
    %1414 = vmatpush1.msra.mxu0 0.0
    %1415 = vmatprep.subr.mxu0 0.0
    %1416 = vmatpush1.msra.mxu0 0.0
    %1417 = vmatprep.subr.mxu0 0.0
    %1418 = vmatpush1.msra.mxu0 0.0
    %1419 = vmatprep.subr.mxu0 0.0
    %1420 = vmatpush1.msra.mxu0 0.0
    %1421 = vmatprep.subr.mxu0 0.0
    %1422 = vmatpush1.msra.mxu0 0.0
    %1423 = vmatprep.subr.mxu0 0.0
    %1424 = vmatpush1.msra.mxu0 0.0
    %1425 = vmatprep.subr.mxu0 0.0
    %1426 = vmatpush1.msra.mxu0 0.0
    %1427 = vmatprep.subr.mxu0 0.0
    %1428 = vmatpush1.msra.mxu0 0.0
    %1429 = vmatprep.subr.mxu0 0.0
    %1430 = vmatpush1.msra.mxu0 0.0
    %1431 = vmatprep.subr.mxu0 0.0
    %1432 = vmatpush1.msra.mxu0 0.0
    %1433 = vmatprep.subr.mxu0 0.0
    %1434 = vmatpush1.msra.mxu0 0.0
    %1435 = vmatprep.subr.mxu0 0.0
    %1436 = vmatpush1.msra.mxu0 0.0
    %1437 = vmatprep.subr.mxu0 0.0
    %1438 = vmatpush1.msra.mxu0 0.0
    %1439 = vmatprep.subr.mxu0 0.0
    %1440 = vmatpush1.msra.mxu0 0.0
    %1441 = vmatprep.subr.mxu0 0.0
    %1442 = vmatpush1.msra.mxu0 0.0
    %1443 = vmatprep.subr.mxu0 0.0
    %1444 = vmatpush1.msra.mxu0 0.0
    %1445 = vmatprep.subr.mxu0 0.0
    %1446 = vmatpush1.msra.mxu0 0.0
    %1447 = vmatprep.subr.mxu0 0.0
    %1448 = vmatpush1.msra.mxu0 0.0
    %1449 = vmatprep.subr.mxu0 0.0
    %1450 = vmatpush1.msra.mxu0 0.0
    %1451 = vmatprep.subr.mxu0 0.0
    %1452 = vmatpush1.msra.mxu0 0.0
    %1453 = vmatprep.subr.mxu0 0.0
    %1454 = vmatpush1.msra.mxu0 0.0
    %1455 = vmatprep.subr.mxu0 0.0
    %1456 = vmatpush1.msra.mxu0 0.0
    %1457 = vmatprep.mubr.f32.mxu0 0.0
    %1458 = vmatmul.mubr.f32.gmra.mrb[0].mxu0 %v1391
    %v1459 = vpop.f32.mrb[0].mxu0
    %v1460 = vadd.f32 0.0, %v1459
    %v1461 = vpop.f32.mrb[0].mxu0
    %1462 = vdwg.mxu0
    %v1463 = vadd.f32 %v1387, %v1460
    %v1464 = vxor.u32 %v1463, 2147483648
    %v1465 = vmul.f32 %v1464, 1.442695
    %v1466 = vpow.pop %v1465
    %v1467 = vadd.f32 %v1466, 1.0
    %v1468 = vrcp.pop %v1467
    %v1469 = vmul.f32 1.0, %v1468
    %v1470 = vtanh.pop %v1463
    %v1471 = vmul.f32 %v1469, %v1380
    %1473 = vrot.lane.b32.xlu0 %v1470, 64
    %v1474 = vpop.permute.xlu0 %1473
    %v1476 = vmul.f32 %v1469, %v1474
    %1478 = vrot.lane.b32.xlu0 %v1476, 32
    %v1479 = vpop.permute.xlu0 %1478
    %v1481 = vadd.f32 %v1471, %v1479
    %v1482 = vtanh.pop %v1481
    %1484 = vrot.lane.b32.xlu0 %v1482, 64
    %v1485 = vpop.permute.xlu0 %1484
    %v1487 = vmul.f32 %v1469, %v1485
    %v1488 = vld [vmem:[%s465] sm:$0x3]
    %1490 = vrot.lane.b32.xlu0 %v1487, 32
    %v1491 = vpop.permute.xlu0 %1490
    %v1492 = vsel %vm255, %v1491, 0
    %1494 = vmatprep.subr.mxu0 0.0
    %1495 = vmatpush1.msra.mxu0 %v1287
    %1496 = vmatprep.subr.mxu0 0.0
    %1497 = vmatpush1.msra.mxu0 %v1288
    %1498 = vmatprep.subr.mxu0 0.0
    %1499 = vmatpush1.msra.mxu0 %v1289
    %1500 = vmatprep.subr.mxu0 0.0
    %1501 = vmatpush1.msra.mxu0 %v1290
    %1502 = vmatprep.subr.mxu0 0.0
    %1503 = vmatpush1.msra.mxu0 0.0
    %1504 = vmatprep.subr.mxu0 0.0
    %1505 = vmatpush1.msra.mxu0 0.0
    %1506 = vmatprep.subr.mxu0 0.0
    %1507 = vmatpush1.msra.mxu0 0.0
    %1508 = vmatprep.subr.mxu0 0.0
    %1509 = vmatpush1.msra.mxu0 0.0
    %1510 = vmatprep.subr.mxu0 0.0
    %1511 = vmatpush1.msra.mxu0 0.0
    %1512 = vmatprep.subr.mxu0 0.0
    %1513 = vmatpush1.msra.mxu0 0.0
    %1514 = vmatprep.subr.mxu0 0.0
    %1515 = vmatpush1.msra.mxu0 0.0
    %1516 = vmatprep.subr.mxu0 0.0
    %1517 = vmatpush1.msra.mxu0 0.0
    %1518 = vmatprep.subr.mxu0 0.0
    %1519 = vmatpush1.msra.mxu0 0.0
    %1520 = vmatprep.subr.mxu0 0.0
    %1521 = vmatpush1.msra.mxu0 0.0
    %1522 = vmatprep.subr.mxu0 0.0
    %1523 = vmatpush1.msra.mxu0 0.0
    %1524 = vmatprep.subr.mxu0 0.0
    %1525 = vmatpush1.msra.mxu0 0.0
    %1526 = vmatprep.subr.mxu0 0.0
    %1527 = vmatpush1.msra.mxu0 0.0
    %1528 = vmatprep.subr.mxu0 0.0
    %1529 = vmatpush1.msra.mxu0 0.0
    %1530 = vmatprep.subr.mxu0 0.0
    %1531 = vmatpush1.msra.mxu0 0.0
    %1532 = vmatprep.subr.mxu0 0.0
    %1533 = vmatpush1.msra.mxu0 0.0
    %1534 = vmatprep.subr.mxu0 0.0
    %1535 = vmatpush1.msra.mxu0 0.0
    %1536 = vmatprep.subr.mxu0 0.0
    %1537 = vmatpush1.msra.mxu0 0.0
    %1538 = vmatprep.subr.mxu0 0.0
    %1539 = vmatpush1.msra.mxu0 0.0
    %1540 = vmatprep.subr.mxu0 0.0
    %1541 = vmatpush1.msra.mxu0 0.0
    %1542 = vmatprep.subr.mxu0 0.0
    %1543 = vmatpush1.msra.mxu0 0.0
    %1544 = vmatprep.subr.mxu0 0.0
    %1545 = vmatpush1.msra.mxu0 0.0
    %1546 = vmatprep.subr.mxu0 0.0
    %1547 = vmatpush1.msra.mxu0 0.0
    %1548 = vmatprep.subr.mxu0 0.0
    %1549 = vmatpush1.msra.mxu0 0.0
    %1550 = vmatprep.subr.mxu0 0.0
    %1551 = vmatpush1.msra.mxu0 0.0
    %1552 = vmatprep.subr.mxu0 0.0
    %1553 = vmatpush1.msra.mxu0 0.0
    %1554 = vmatprep.subr.mxu0 0.0
    %1555 = vmatpush1.msra.mxu0 0.0
    %1556 = vmatprep.subr.mxu0 0.0
    %1557 = vmatpush1.msra.mxu0 0.0
    %1558 = vmatprep.mubr.f32.mxu0 0.0
    %1559 = vmatmul.mubr.f32.gmra.mrb[0].mxu0 %v1492
    %v1560 = vpop.f32.mrb[0].mxu0
    %v1561 = vadd.f32 0.0, %v1560
    %v1562 = vpop.f32.mrb[0].mxu0
    %1563 = vdwg.mxu0
    %v1564 = vadd.f32 %v1488, %v1561
    %v1565 = vxor.u32 %v1564, 2147483648
    %v1566 = vmul.f32 %v1565, 1.442695
    %v1567 = vpow.pop %v1566
    %v1568 = vadd.f32 %v1567, 1.0
    %v1569 = vrcp.pop %v1568
    %v1570 = vmul.f32 1.0, %v1569
    %v1571 = vtanh.pop %v1564
    %v1572 = vmul.f32 %v1570, %v1481
    %1574 = vrot.lane.b32.xlu0 %v1571, 64
    %v1575 = vpop.permute.xlu0 %1574
    %v1577 = vmul.f32 %v1570, %v1575
    %1579 = vrot.lane.b32.xlu0 %v1577, 32
    %v1580 = vpop.permute.xlu0 %1579
    %v1582 = vadd.f32 %v1572, %v1580
    %v1583 = vtanh.pop %v1582
    %1585 = vrot.lane.b32.xlu0 %v1583, 64
    %v1586 = vpop.permute.xlu0 %1585
    %v1588 = vmul.f32 %v1570, %v1586
    %v1589 = vld [vmem:[%s570] sm:$0x3]
    %1591 = vrot.lane.b32.xlu0 %v1588, 32
    %v1592 = vpop.permute.xlu0 %1591
    %v1593 = vsel %vm255, %v1592, 0
    %1595 = vmatprep.subr.mxu0 0.0
    %1596 = vmatpush1.msra.mxu0 %v1287
    %1597 = vmatprep.subr.mxu0 0.0
    %1598 = vmatpush1.msra.mxu0 %v1288
    %1599 = vmatprep.subr.mxu0 0.0
    %1600 = vmatpush1.msra.mxu0 %v1289
    %1601 = vmatprep.subr.mxu0 0.0
    %1602 = vmatpush1.msra.mxu0 %v1290
    %1603 = vmatprep.subr.mxu0 0.0
    %1604 = vmatpush1.msra.mxu0 0.0
    %1605 = vmatprep.subr.mxu0 0.0
    %1606 = vmatpush1.msra.mxu0 0.0
    %1607 = vmatprep.subr.mxu0 0.0
    %1608 = vmatpush1.msra.mxu0 0.0
    %1609 = vmatprep.subr.mxu0 0.0
    %1610 = vmatpush1.msra.mxu0 0.0
    %1611 = vmatprep.subr.mxu0 0.0
    %1612 = vmatpush1.msra.mxu0 0.0
    %1613 = vmatprep.subr.mxu0 0.0
    %1614 = vmatpush1.msra.mxu0 0.0
    %1615 = vmatprep.subr.mxu0 0.0
    %1616 = vmatpush1.msra.mxu0 0.0
    %1617 = vmatprep.subr.mxu0 0.0
    %1618 = vmatpush1.msra.mxu0 0.0
    %1619 = vmatprep.subr.mxu0 0.0
    %1620 = vmatpush1.msra.mxu0 0.0
    %1621 = vmatprep.subr.mxu0 0.0
    %1622 = vmatpush1.msra.mxu0 0.0
    %1623 = vmatprep.subr.mxu0 0.0
    %1624 = vmatpush1.msra.mxu0 0.0
    %1625 = vmatprep.subr.mxu0 0.0
    %1626 = vmatpush1.msra.mxu0 0.0
    %1627 = vmatprep.subr.mxu0 0.0
    %1628 = vmatpush1.msra.mxu0 0.0
    %1629 = vmatprep.subr.mxu0 0.0
    %1630 = vmatpush1.msra.mxu0 0.0
    %1631 = vmatprep.subr.mxu0 0.0
    %1632 = vmatpush1.msra.mxu0 0.0
    %1633 = vmatprep.subr.mxu0 0.0
    %1634 = vmatpush1.msra.mxu0 0.0
    %1635 = vmatprep.subr.mxu0 0.0
    %1636 = vmatpush1.msra.mxu0 0.0
    %1637 = vmatprep.subr.mxu0 0.0
    %1638 = vmatpush1.msra.mxu0 0.0
    %1639 = vmatprep.subr.mxu0 0.0
    %1640 = vmatpush1.msra.mxu0 0.0
    %1641 = vmatprep.subr.mxu0 0.0
    %1642 = vmatpush1.msra.mxu0 0.0
    %1643 = vmatprep.subr.mxu0 0.0
    %1644 = vmatpush1.msra.mxu0 0.0
    %1645 = vmatprep.subr.mxu0 0.0
    %1646 = vmatpush1.msra.mxu0 0.0
    %1647 = vmatprep.subr.mxu0 0.0
    %1648 = vmatpush1.msra.mxu0 0.0
    %1649 = vmatprep.subr.mxu0 0.0
    %1650 = vmatpush1.msra.mxu0 0.0
    %1651 = vmatprep.subr.mxu0 0.0
    %1652 = vmatpush1.msra.mxu0 0.0
    %1653 = vmatprep.subr.mxu0 0.0
    %1654 = vmatpush1.msra.mxu0 0.0
    %1655 = vmatprep.subr.mxu0 0.0
    %1656 = vmatpush1.msra.mxu0 0.0
    %1657 = vmatprep.subr.mxu0 0.0
    %1658 = vmatpush1.msra.mxu0 0.0
    %1659 = vmatprep.mubr.f32.mxu0 0.0
    %1660 = vmatmul.mubr.f32.gmra.mrb[0].mxu0 %v1593
    %v1661 = vpop.f32.mrb[0].mxu0
    %v1662 = vadd.f32 0.0, %v1661
    %v1663 = vpop.f32.mrb[0].mxu0
    %1664 = vdwg.mxu0
    %v1665 = vadd.f32 %v1589, %v1662
    %v1666 = vxor.u32 %v1665, 2147483648
    %v1667 = vmul.f32 %v1666, 1.442695
    %v1668 = vpow.pop %v1667
    %v1669 = vadd.f32 %v1668, 1.0
    %v1670 = vrcp.pop %v1669
    %v1671 = vmul.f32 1.0, %v1670
    %v1672 = vtanh.pop %v1665
    %v1673 = vmul.f32 %v1671, %v1582
    %1675 = vrot.lane.b32.xlu0 %v1672, 64
    %v1676 = vpop.permute.xlu0 %1675
    %v1678 = vmul.f32 %v1671, %v1676
    %1680 = vrot.lane.b32.xlu0 %v1678, 32
    %v1681 = vpop.permute.xlu0 %1680
    %v1683 = vadd.f32 %v1673, %v1681
    %v1684 = vtanh.pop %v1683
    %1686 = vrot.lane.b32.xlu0 %v1684, 64
    %v1687 = vpop.permute.xlu0 %1686
    %v1689 = vmul.f32 %v1671, %v1687
    %v1690 = vld [vmem:[%s675] sm:$0x3]
    %1692 = vrot.lane.b32.xlu0 %v1689, 32
    %v1693 = vpop.permute.xlu0 %1692
    %v1694 = vsel %vm255, %v1693, 0
    %1696 = vmatprep.subr.mxu0 0.0
    %1697 = vmatpush1.msra.mxu0 %v1287
    %1698 = vmatprep.subr.mxu0 0.0
    %1699 = vmatpush1.msra.mxu0 %v1288
    %1700 = vmatprep.subr.mxu0 0.0
    %1701 = vmatpush1.msra.mxu0 %v1289
    %1702 = vmatprep.subr.mxu0 0.0
    %1703 = vmatpush1.msra.mxu0 %v1290
    %1704 = vmatprep.subr.mxu0 0.0
    %1705 = vmatpush1.msra.mxu0 0.0
    %1706 = vmatprep.subr.mxu0 0.0
    %1707 = vmatpush1.msra.mxu0 0.0
    %1708 = vmatprep.subr.mxu0 0.0
    %1709 = vmatpush1.msra.mxu0 0.0
    %1710 = vmatprep.subr.mxu0 0.0
    %1711 = vmatpush1.msra.mxu0 0.0
    %1712 = vmatprep.subr.mxu0 0.0
    %1713 = vmatpush1.msra.mxu0 0.0
    %1714 = vmatprep.subr.mxu0 0.0
    %1715 = vmatpush1.msra.mxu0 0.0
    %1716 = vmatprep.subr.mxu0 0.0
    %1717 = vmatpush1.msra.mxu0 0.0
    %1718 = vmatprep.subr.mxu0 0.0
    %1719 = vmatpush1.msra.mxu0 0.0
    %1720 = vmatprep.subr.mxu0 0.0
    %1721 = vmatpush1.msra.mxu0 0.0
    %1722 = vmatprep.subr.mxu0 0.0
    %1723 = vmatpush1.msra.mxu0 0.0
    %1724 = vmatprep.subr.mxu0 0.0
    %1725 = vmatpush1.msra.mxu0 0.0
    %1726 = vmatprep.subr.mxu0 0.0
    %1727 = vmatpush1.msra.mxu0 0.0
    %1728 = vmatprep.subr.mxu0 0.0
    %1729 = vmatpush1.msra.mxu0 0.0
    %1730 = vmatprep.subr.mxu0 0.0
    %1731 = vmatpush1.msra.mxu0 0.0
    %1732 = vmatprep.subr.mxu0 0.0
    %1733 = vmatpush1.msra.mxu0 0.0
    %1734 = vmatprep.subr.mxu0 0.0
    %1735 = vmatpush1.msra.mxu0 0.0
    %1736 = vmatprep.subr.mxu0 0.0
    %1737 = vmatpush1.msra.mxu0 0.0
    %1738 = vmatprep.subr.mxu0 0.0
    %1739 = vmatpush1.msra.mxu0 0.0
    %1740 = vmatprep.subr.mxu0 0.0
    %1741 = vmatpush1.msra.mxu0 0.0
    %1742 = vmatprep.subr.mxu0 0.0
    %1743 = vmatpush1.msra.mxu0 0.0
    %1744 = vmatprep.subr.mxu0 0.0
    %1745 = vmatpush1.msra.mxu0 0.0
    %1746 = vmatprep.subr.mxu0 0.0
    %1747 = vmatpush1.msra.mxu0 0.0
    %1748 = vmatprep.subr.mxu0 0.0
    %1749 = vmatpush1.msra.mxu0 0.0
    %1750 = vmatprep.subr.mxu0 0.0
    %1751 = vmatpush1.msra.mxu0 0.0
    %1752 = vmatprep.subr.mxu0 0.0
    %1753 = vmatpush1.msra.mxu0 0.0
    %1754 = vmatprep.subr.mxu0 0.0
    %1755 = vmatpush1.msra.mxu0 0.0
    %1756 = vmatprep.subr.mxu0 0.0
    %1757 = vmatpush1.msra.mxu0 0.0
    %1758 = vmatprep.subr.mxu0 0.0
    %1759 = vmatpush1.msra.mxu0 0.0
    %1760 = vmatprep.mubr.f32.mxu0 0.0
    %1761 = vmatmul.mubr.f32.gmra.mrb[0].mxu0 %v1694
    %v1762 = vpop.f32.mrb[0].mxu0
    %v1763 = vadd.f32 0.0, %v1762
    %v1764 = vpop.f32.mrb[0].mxu0
    %1765 = vdwg.mxu0
    %v1766 = vadd.f32 %v1690, %v1763
    %v1767 = vxor.u32 %v1766, 2147483648
    %v1768 = vmul.f32 %v1767, 1.442695
    %v1769 = vpow.pop %v1768
    %v1770 = vadd.f32 %v1769, 1.0
    %v1771 = vrcp.pop %v1770
    %v1772 = vmul.f32 1.0, %v1771
    %v1773 = vtanh.pop %v1766
    %v1774 = vmul.f32 %v1772, %v1683
    %1776 = vrot.lane.b32.xlu0 %v1773, 64
    %v1777 = vpop.permute.xlu0 %1776
    %v1779 = vmul.f32 %v1772, %v1777
    %1781 = vrot.lane.b32.xlu0 %v1779, 32
    %v1782 = vpop.permute.xlu0 %1781
    %v1784 = vadd.f32 %v1774, %v1782
    %v1785 = vtanh.pop %v1784
    %1787 = vrot.lane.b32.xlu0 %v1785, 64
    %v1788 = vpop.permute.xlu0 %1787
    %v1790 = vmul.f32 %v1772, %v1788
    %v1791 = vld [vmem:[%s780] sm:$0x3]
    %1793 = vrot.lane.b32.xlu0 %v1790, 32
    %v1794 = vpop.permute.xlu0 %1793
    %v1795 = vsel %vm255, %v1794, 0
    %1797 = vmatprep.subr.mxu0 0.0
    %1798 = vmatpush1.msra.mxu0 %v1287
    %1799 = vmatprep.subr.mxu0 0.0
    %1800 = vmatpush1.msra.mxu0 %v1288
    %1801 = vmatprep.subr.mxu0 0.0
    %1802 = vmatpush1.msra.mxu0 %v1289
    %1803 = vmatprep.subr.mxu0 0.0
    %1804 = vmatpush1.msra.mxu0 %v1290
    %1805 = vmatprep.subr.mxu0 0.0
    %1806 = vmatpush1.msra.mxu0 0.0
    %1807 = vmatprep.subr.mxu0 0.0
    %1808 = vmatpush1.msra.mxu0 0.0
    %1809 = vmatprep.subr.mxu0 0.0
    %1810 = vmatpush1.msra.mxu0 0.0
    %1811 = vmatprep.subr.mxu0 0.0
    %1812 = vmatpush1.msra.mxu0 0.0
    %1813 = vmatprep.subr.mxu0 0.0
    %1814 = vmatpush1.msra.mxu0 0.0
    %1815 = vmatprep.subr.mxu0 0.0
    %1816 = vmatpush1.msra.mxu0 0.0
    %1817 = vmatprep.subr.mxu0 0.0
    %1818 = vmatpush1.msra.mxu0 0.0
    %1819 = vmatprep.subr.mxu0 0.0
    %1820 = vmatpush1.msra.mxu0 0.0
    %1821 = vmatprep.subr.mxu0 0.0
    %1822 = vmatpush1.msra.mxu0 0.0
    %1823 = vmatprep.subr.mxu0 0.0
    %1824 = vmatpush1.msra.mxu0 0.0
    %1825 = vmatprep.subr.mxu0 0.0
    %1826 = vmatpush1.msra.mxu0 0.0
    %1827 = vmatprep.subr.mxu0 0.0
    %1828 = vmatpush1.msra.mxu0 0.0
    %1829 = vmatprep.subr.mxu0 0.0
    %1830 = vmatpush1.msra.mxu0 0.0
    %1831 = vmatprep.subr.mxu0 0.0
    %1832 = vmatpush1.msra.mxu0 0.0
    %1833 = vmatprep.subr.mxu0 0.0
    %1834 = vmatpush1.msra.mxu0 0.0
    %1835 = vmatprep.subr.mxu0 0.0
    %1836 = vmatpush1.msra.mxu0 0.0
    %1837 = vmatprep.subr.mxu0 0.0
    %1838 = vmatpush1.msra.mxu0 0.0
    %1839 = vmatprep.subr.mxu0 0.0
    %1840 = vmatpush1.msra.mxu0 0.0
    %1841 = vmatprep.subr.mxu0 0.0
    %1842 = vmatpush1.msra.mxu0 0.0
    %1843 = vmatprep.subr.mxu0 0.0
    %1844 = vmatpush1.msra.mxu0 0.0
    %1845 = vmatprep.subr.mxu0 0.0
    %1846 = vmatpush1.msra.mxu0 0.0
    %1847 = vmatprep.subr.mxu0 0.0
    %1848 = vmatpush1.msra.mxu0 0.0
    %1849 = vmatprep.subr.mxu0 0.0
    %1850 = vmatpush1.msra.mxu0 0.0
    %1851 = vmatprep.subr.mxu0 0.0
    %1852 = vmatpush1.msra.mxu0 0.0
    %1853 = vmatprep.subr.mxu0 0.0
    %1854 = vmatpush1.msra.mxu0 0.0
    %1855 = vmatprep.subr.mxu0 0.0
    %1856 = vmatpush1.msra.mxu0 0.0
    %1857 = vmatprep.subr.mxu0 0.0
    %1858 = vmatpush1.msra.mxu0 0.0
    %1859 = vmatprep.subr.mxu0 0.0
    %1860 = vmatpush1.msra.mxu0 0.0
    %1861 = vmatprep.mubr.f32.mxu0 0.0
    %1862 = vmatmul.mubr.f32.gmra.mrb[0].mxu0 %v1795
    %v1863 = vpop.f32.mrb[0].mxu0
    %v1864 = vadd.f32 0.0, %v1863
    %v1865 = vpop.f32.mrb[0].mxu0
    %1866 = vdwg.mxu0
    %v1867 = vadd.f32 %v1791, %v1864
    %v1868 = vxor.u32 %v1867, 2147483648
    %v1869 = vmul.f32 %v1868, 1.442695
    %v1870 = vpow.pop %v1869
    %v1871 = vadd.f32 %v1870, 1.0
    %v1872 = vrcp.pop %v1871
    %v1873 = vmul.f32 1.0, %v1872
    %v1874 = vtanh.pop %v1867
    %v1875 = vmul.f32 %v1873, %v1784
    %1877 = vrot.lane.b32.xlu0 %v1874, 64
    %v1878 = vpop.permute.xlu0 %1877
    %v1880 = vmul.f32 %v1873, %v1878
    %1882 = vrot.lane.b32.xlu0 %v1880, 32
    %v1883 = vpop.permute.xlu0 %1882
    %v1885 = vadd.f32 %v1875, %v1883
    %v1886 = vtanh.pop %v1885
    %1888 = vrot.lane.b32.xlu0 %v1886, 64
    %v1889 = vpop.permute.xlu0 %1888
    %v1891 = vmul.f32 %v1873, %v1889
    %v1892 = vld [vmem:[%s885] sm:$0x3]
    %1894 = vrot.lane.b32.xlu0 %v1891, 32
    %v1895 = vpop.permute.xlu0 %1894
    %v1896 = vsel %vm255, %v1895, 0
    %1898 = vmatprep.subr.mxu0 0.0
    %1899 = vmatpush1.msra.mxu0 %v1287
    %1900 = vmatprep.subr.mxu0 0.0
    %1901 = vmatpush1.msra.mxu0 %v1288
    %1902 = vmatprep.subr.mxu0 0.0
    %1903 = vmatpush1.msra.mxu0 %v1289
    %1904 = vmatprep.subr.mxu0 0.0
    %1905 = vmatpush1.msra.mxu0 %v1290
    %1906 = vmatprep.subr.mxu0 0.0
    %1907 = vmatpush1.msra.mxu0 0.0
    %1908 = vmatprep.subr.mxu0 0.0
    %1909 = vmatpush1.msra.mxu0 0.0
    %1910 = vmatprep.subr.mxu0 0.0
    %1911 = vmatpush1.msra.mxu0 0.0
    %1912 = vmatprep.subr.mxu0 0.0
    %1913 = vmatpush1.msra.mxu0 0.0
    %1914 = vmatprep.subr.mxu0 0.0
    %1915 = vmatpush1.msra.mxu0 0.0
    %1916 = vmatprep.subr.mxu0 0.0
    %1917 = vmatpush1.msra.mxu0 0.0
    %1918 = vmatprep.subr.mxu0 0.0
    %1919 = vmatpush1.msra.mxu0 0.0
    %1920 = vmatprep.subr.mxu0 0.0
    %1921 = vmatpush1.msra.mxu0 0.0
    %1922 = vmatprep.subr.mxu0 0.0
    %1923 = vmatpush1.msra.mxu0 0.0
    %1924 = vmatprep.subr.mxu0 0.0
    %1925 = vmatpush1.msra.mxu0 0.0
    %1926 = vmatprep.subr.mxu0 0.0
    %1927 = vmatpush1.msra.mxu0 0.0
    %1928 = vmatprep.subr.mxu0 0.0
    %1929 = vmatpush1.msra.mxu0 0.0
    %1930 = vmatprep.subr.mxu0 0.0
    %1931 = vmatpush1.msra.mxu0 0.0
    %1932 = vmatprep.subr.mxu0 0.0
    %1933 = vmatpush1.msra.mxu0 0.0
    %1934 = vmatprep.subr.mxu0 0.0
    %1935 = vmatpush1.msra.mxu0 0.0
    %1936 = vmatprep.subr.mxu0 0.0
    %1937 = vmatpush1.msra.mxu0 0.0
    %1938 = vmatprep.subr.mxu0 0.0
    %1939 = vmatpush1.msra.mxu0 0.0
    %1940 = vmatprep.subr.mxu0 0.0
    %1941 = vmatpush1.msra.mxu0 0.0
    %1942 = vmatprep.subr.mxu0 0.0
    %1943 = vmatpush1.msra.mxu0 0.0
    %1944 = vmatprep.subr.mxu0 0.0
    %1945 = vmatpush1.msra.mxu0 0.0
    %1946 = vmatprep.subr.mxu0 0.0
    %1947 = vmatpush1.msra.mxu0 0.0
    %1948 = vmatprep.subr.mxu0 0.0
    %1949 = vmatpush1.msra.mxu0 0.0
    %1950 = vmatprep.subr.mxu0 0.0
    %1951 = vmatpush1.msra.mxu0 0.0
    %1952 = vmatprep.subr.mxu0 0.0
    %1953 = vmatpush1.msra.mxu0 0.0
    %1954 = vmatprep.subr.mxu0 0.0
    %1955 = vmatpush1.msra.mxu0 0.0
    %1956 = vmatprep.subr.mxu0 0.0
    %1957 = vmatpush1.msra.mxu0 0.0
    %1958 = vmatprep.subr.mxu0 0.0
    %1959 = vmatpush1.msra.mxu0 0.0
    %1960 = vmatprep.subr.mxu0 0.0
    %1961 = vmatpush1.msra.mxu0 0.0
    %1962 = vmatprep.mubr.f32.mxu0 0.0
    %1963 = vmatmul.mubr.f32.gmra.mrb[0].mxu0 %v1896
    %v1964 = vpop.f32.mrb[0].mxu0
    %v1965 = vadd.f32 0.0, %v1964
    %v1966 = vpop.f32.mrb[0].mxu0
    %1967 = vdwg.mxu0
    %v1968 = vadd.f32 %v1892, %v1965
    %v1969 = vxor.u32 %v1968, 2147483648
    %v1970 = vmul.f32 %v1969, 1.442695
    %v1971 = vpow.pop %v1970
    %v1972 = vadd.f32 %v1971, 1.0
    %v1973 = vrcp.pop %v1972
    %v1974 = vmul.f32 1.0, %v1973
    %v1975 = vtanh.pop %v1968
    %v1976 = vmul.f32 %v1974, %v1885
    %1978 = vrot.lane.b32.xlu0 %v1975, 64
    %v1979 = vpop.permute.xlu0 %1978
    %v1981 = vmul.f32 %v1974, %v1979
    %1983 = vrot.lane.b32.xlu0 %v1981, 32
    %v1984 = vpop.permute.xlu0 %1983
    %v1986 = vadd.f32 %v1976, %v1984
    %v1987 = vtanh.pop %v1986
    %1989 = vrot.lane.b32.xlu0 %v1987, 64
    %v1990 = vpop.permute.xlu0 %1989
    %v1992 = vmul.f32 %v1974, %v1990
    %v1993 = vld [vmem:[%s990] sm:$0x3]
    %1995 = vrot.lane.b32.xlu0 %v1992, 32
    %v1996 = vpop.permute.xlu0 %1995
    %v1997 = vsel %vm255, %v1996, 0
    %1999 = vmatprep.subr.mxu0 0.0
    %2000 = vmatpush1.msra.mxu0 %v1287
    %2001 = vmatprep.subr.mxu0 0.0
    %2002 = vmatpush1.msra.mxu0 %v1288
    %2003 = vmatprep.subr.mxu0 0.0
    %2004 = vmatpush1.msra.mxu0 %v1289
    %2005 = vmatprep.subr.mxu0 0.0
    %2006 = vmatpush1.msra.mxu0 %v1290
    %2007 = vmatprep.subr.mxu0 0.0
    %2008 = vmatpush1.msra.mxu0 0.0
    %2009 = vmatprep.subr.mxu0 0.0
    %2010 = vmatpush1.msra.mxu0 0.0
    %2011 = vmatprep.subr.mxu0 0.0
    %2012 = vmatpush1.msra.mxu0 0.0
    %2013 = vmatprep.subr.mxu0 0.0
    %2014 = vmatpush1.msra.mxu0 0.0
    %2015 = vmatprep.subr.mxu0 0.0
    %2016 = vmatpush1.msra.mxu0 0.0
    %2017 = vmatprep.subr.mxu0 0.0
    %2018 = vmatpush1.msra.mxu0 0.0
    %2019 = vmatprep.subr.mxu0 0.0
    %2020 = vmatpush1.msra.mxu0 0.0
    %2021 = vmatprep.subr.mxu0 0.0
    %2022 = vmatpush1.msra.mxu0 0.0
    %2023 = vmatprep.subr.mxu0 0.0
    %2024 = vmatpush1.msra.mxu0 0.0
    %2025 = vmatprep.subr.mxu0 0.0
    %2026 = vmatpush1.msra.mxu0 0.0
    %2027 = vmatprep.subr.mxu0 0.0
    %2028 = vmatpush1.msra.mxu0 0.0
    %2029 = vmatprep.subr.mxu0 0.0
    %2030 = vmatpush1.msra.mxu0 0.0
    %2031 = vmatprep.subr.mxu0 0.0
    %2032 = vmatpush1.msra.mxu0 0.0
    %2033 = vmatprep.subr.mxu0 0.0
    %2034 = vmatpush1.msra.mxu0 0.0
    %2035 = vmatprep.subr.mxu0 0.0
    %2036 = vmatpush1.msra.mxu0 0.0
    %2037 = vmatprep.subr.mxu0 0.0
    %2038 = vmatpush1.msra.mxu0 0.0
    %2039 = vmatprep.subr.mxu0 0.0
    %2040 = vmatpush1.msra.mxu0 0.0
    %2041 = vmatprep.subr.mxu0 0.0
    %2042 = vmatpush1.msra.mxu0 0.0
    %2043 = vmatprep.subr.mxu0 0.0
    %2044 = vmatpush1.msra.mxu0 0.0
    %2045 = vmatprep.subr.mxu0 0.0
    %2046 = vmatpush1.msra.mxu0 0.0
    %2047 = vmatprep.subr.mxu0 0.0
    %2048 = vmatpush1.msra.mxu0 0.0
    %2049 = vmatprep.subr.mxu0 0.0
    %2050 = vmatpush1.msra.mxu0 0.0
    %2051 = vmatprep.subr.mxu0 0.0
    %2052 = vmatpush1.msra.mxu0 0.0
    %2053 = vmatprep.subr.mxu0 0.0
    %2054 = vmatpush1.msra.mxu0 0.0
    %2055 = vmatprep.subr.mxu0 0.0
    %2056 = vmatpush1.msra.mxu0 0.0
    %2057 = vmatprep.subr.mxu0 0.0
    %2058 = vmatpush1.msra.mxu0 0.0
    %2059 = vmatprep.subr.mxu0 0.0
    %2060 = vmatpush1.msra.mxu0 0.0
    %2061 = vmatprep.subr.mxu0 0.0
    %2062 = vmatpush1.msra.mxu0 0.0
    %2063 = vmatprep.mubr.f32.mxu0 0.0
    %2064 = vmatmul.mubr.f32.gmra.mrb[0].mxu0 %v1997
    %v2065 = vpop.f32.mrb[0].mxu0
    %v2066 = vadd.f32 0.0, %v2065
    %v2067 = vpop.f32.mrb[0].mxu0
    %2068 = vdwg.mxu0
    %v2069 = vadd.f32 %v1993, %v2066
    %v2070 = vxor.u32 %v2069, 2147483648
    %v2071 = vmul.f32 %v2070, 1.442695
    %v2072 = vpow.pop %v2071
    %v2073 = vadd.f32 %v2072, 1.0
    %v2074 = vrcp.pop %v2073
    %v2075 = vmul.f32 1.0, %v2074
    %v2076 = vtanh.pop %v2069
    %v2077 = vmul.f32 %v2075, %v1986
    %2079 = vrot.lane.b32.xlu0 %v2076, 64
    %v2080 = vpop.permute.xlu0 %2079
    %v2082 = vmul.f32 %v2075, %v2080
    %2084 = vrot.lane.b32.xlu0 %v2082, 32
    %v2085 = vpop.permute.xlu0 %2084
    %v2087 = vadd.f32 %v2077, %v2085
    %v2088 = vtanh.pop %v2087
    %2090 = vrot.lane.b32.xlu0 %v2088, 64
    %v2091 = vpop.permute.xlu0 %2090
    %v2093 = vmul.f32 %v2075, %v2091
    %v2094 = vld [vmem:[%s7] sm:$0xff]
    %v2095 = vld [vmem:[%s7 + $0x8] sm:$0xff]
    %v2096 = vld [vmem:[%s7 + $0x10] sm:$0xff]
    %v2097 = vld [vmem:[%s7 + $0x18] sm:$0xff]
    %v2098 = vld [vmem:[#allocation7] sm:$0x1]
    %v2100 = vlaneseq
    %v2101 = vshrl.u32 %v2100, 7
    %v2102 = vsub.s32 0, %v2101
    %v2103 = vrot.slane %v2098, %v2102
    %2106 = vrot.lane.b32.xlu0 %v2093, 32
    %v2107 = vpop.permute.xlu0 %2106
    %v2108 = vsel %vm255, %v2107, 0
    %2110 = vmatprep.subr.mxu0 0.0
    %2111 = vmatpush1.msra.mxu0 %v2094
    %2112 = vmatprep.subr.mxu0 0.0
    %2113 = vmatpush1.msra.mxu0 %v2095
    %2114 = vmatprep.subr.mxu0 0.0
    %2115 = vmatpush1.msra.mxu0 %v2096
    %2116 = vmatprep.subr.mxu0 0.0
    %2117 = vmatpush1.msra.mxu0 %v2097
    %2118 = vmatprep.subr.mxu0 0.0
    %2119 = vmatpush1.msra.mxu0 0.0
    %2120 = vmatprep.subr.mxu0 0.0
    %2121 = vmatpush1.msra.mxu0 0.0
    %2122 = vmatprep.subr.mxu0 0.0
    %2123 = vmatpush1.msra.mxu0 0.0
    %2124 = vmatprep.subr.mxu0 0.0
    %2125 = vmatpush1.msra.mxu0 0.0
    %2126 = vmatprep.subr.mxu0 0.0
    %2127 = vmatpush1.msra.mxu0 0.0
    %2128 = vmatprep.subr.mxu0 0.0
    %2129 = vmatpush1.msra.mxu0 0.0
    %2130 = vmatprep.subr.mxu0 0.0
    %2131 = vmatpush1.msra.mxu0 0.0
    %2132 = vmatprep.subr.mxu0 0.0
    %2133 = vmatpush1.msra.mxu0 0.0
    %2134 = vmatprep.subr.mxu0 0.0
    %2135 = vmatpush1.msra.mxu0 0.0
    %2136 = vmatprep.subr.mxu0 0.0
    %2137 = vmatpush1.msra.mxu0 0.0
    %2138 = vmatprep.subr.mxu0 0.0
    %2139 = vmatpush1.msra.mxu0 0.0
    %2140 = vmatprep.subr.mxu0 0.0
    %2141 = vmatpush1.msra.mxu0 0.0
    %2142 = vmatprep.subr.mxu0 0.0
    %2143 = vmatpush1.msra.mxu0 0.0
    %2144 = vmatprep.subr.mxu0 0.0
    %2145 = vmatpush1.msra.mxu0 0.0
    %2146 = vmatprep.subr.mxu0 0.0
    %2147 = vmatpush1.msra.mxu0 0.0
    %2148 = vmatprep.subr.mxu0 0.0
    %2149 = vmatpush1.msra.mxu0 0.0
    %2150 = vmatprep.subr.mxu0 0.0
    %2151 = vmatpush1.msra.mxu0 0.0
    %2152 = vmatprep.subr.mxu0 0.0
    %2153 = vmatpush1.msra.mxu0 0.0
    %2154 = vmatprep.subr.mxu0 0.0
    %2155 = vmatpush1.msra.mxu0 0.0
    %2156 = vmatprep.subr.mxu0 0.0
    %2157 = vmatpush1.msra.mxu0 0.0
    %2158 = vmatprep.subr.mxu0 0.0
    %2159 = vmatpush1.msra.mxu0 0.0
    %2160 = vmatprep.subr.mxu0 0.0
    %2161 = vmatpush1.msra.mxu0 0.0
    %2162 = vmatprep.subr.mxu0 0.0
    %2163 = vmatpush1.msra.mxu0 0.0
    %2164 = vmatprep.subr.mxu0 0.0
    %2165 = vmatpush1.msra.mxu0 0.0
    %2166 = vmatprep.subr.mxu0 0.0
    %2167 = vmatpush1.msra.mxu0 0.0
    %2168 = vmatprep.subr.mxu0 0.0
    %2169 = vmatpush1.msra.mxu0 0.0
    %2170 = vmatprep.subr.mxu0 0.0
    %2171 = vmatpush1.msra.mxu0 0.0
    %2172 = vmatprep.subr.mxu0 0.0
    %2173 = vmatpush1.msra.mxu0 0.0
    %2174 = vmatprep.mubr.f32.mxu0 0.0
    %2175 = vmatmul.mubr.f32.gmra.mrb[0].mxu0 %v2108
    %v2176 = vpop.f32.mrb[0].mxu0
    %v2177 = vadd.f32 %v2103, %v2176
    %v2178 = vpop.f32.mrb[0].mxu0
    %2179 = vdwg.mxu0
    %vm2180 = vcmask 58368
    %2181 = vst.msk [vmem:[#allocation9] sm:$0x3] %vm2180, %v2177
    // Predicated region
    $region46: #{lstm_net_forward.1} parent=1 // pred_check
      _
    $region47: #{lstm_net_forward.1} parent=1 // pred_check_branch
      %2183 = sbr.rel (0) target = $region49
    $region48: #{lstm_net_forward.1} parent=1 // pred_region
      %s2185 = ssub.s32 32, 32
      %2186 = vsyncadd [#allocation6], %s2185
      %s2188 = sshll.u32 [#allocation9], 4
      %s2189 = int_to_ptr.vmem [resolvable:$true] %s2188
      %2191 = dma.vmem_to_hbm [thread:$0]  %s2189, 32, %s9, [#allocation6]
    $region49: #{lstm_net_forward.1} parent=1 // pred_fallthru
      _
    // Predicated region
    $region50: #{lstm_net_forward.1} parent=1 // pred_check
      _
    $region51: #{lstm_net_forward.1} parent=1 // pred_check_branch
      %2193 = sbr.rel (0) target = $region53
    $region52: #{lstm_net_forward.1} parent=1 // pred_region
      %2194 = dma.done [#allocation6], 32
    $region53: #{lstm_net_forward.1} parent=1 // pred_fallthru
      _
    %2195 = vsyncpa [#allocation5], 1
    %2196 = vsyncpa [#allocation8], 1
    %2197 = vsyncpa [#allocation6], 1

</llo_original>
